<compile_context>
chip_gen: v7x
topology: tpu7x:2x2x1
jax: 0.10.0
libtpu: 0.0.40
codegen_flags: <defaults>
</compile_context>

<pallas_src>
import functools

import jax
import jax.numpy as jnp
from jax import lax
from jax.experimental import pallas as pl
from jax.experimental.pallas import tpu as pltpu


# ----------------------------------------------------------------------------
# Fused residual-block kernel
# ----------------------------------------------------------------------------
def _residual_block_kernel(*refs, rows, cmid, ho, wo, has_downsample):
    if has_downsample:
        (x_ref, w1_ref, b1_ref, w2_ref, b2_ref, w3_ref, b3_ref,
         wd_ref, bd_ref, o_ref, mid_ref) = refs
    else:
        (x_ref, w1_ref, b1_ref, w2_ref, b2_ref, w3_ref, b3_ref,
         o_ref, mid_ref) = refs

    x2d = x_ref[...]                                    # [rows, Cin] bf16

    # ---- conv1 (1x1, BN scale pre-folded into w1) + bias + relu
    y1 = jnp.dot(x2d, w1_ref[...], preferred_element_type=jnp.float32)
    y1 = jnp.maximum(y1 + b1_ref[...], 0.0)

    # ---- stage the zero-padded (pad=1) conv2 input in a bf16 VMEM scratch.
    # Zero only the halo; the interior is fully overwritten right below.
    mid_ref[0:1, :, :] = jnp.zeros((1, wo + 2, cmid), jnp.bfloat16)
    mid_ref[ho + 1:ho + 2, :, :] = jnp.zeros((1, wo + 2, cmid), jnp.bfloat16)
    mid_ref[:, 0:1, :] = jnp.zeros((ho + 2, 1, cmid), jnp.bfloat16)
    mid_ref[:, wo + 1:wo + 2, :] = jnp.zeros((ho + 2, 1, cmid), jnp.bfloat16)
    mid_ref[1:ho + 1, 1:wo + 1, :] = (
        y1.reshape(ho, wo, cmid).astype(jnp.bfloat16))

    # ---- conv2 (3x3, pad 1, stride 1): ONE MXU matmul on an in-VMEM im2col
    # operand [rows, 9*cmid]; w2 was reshaped host-side to [9*cmid, cmid].
    taps = []
    for k in range(9):                                  # statically unrolled
        dh, dw = divmod(k, 3)
        taps.append(mid_ref[dh:dh + ho, dw:dw + wo, :].reshape(rows, cmid))
    im2col = jnp.concatenate(taps, axis=-1)             # [rows, 9*cmid] bf16
    y2 = jnp.dot(im2col, w2_ref[...], preferred_element_type=jnp.float32)
    y2 = jnp.maximum(y2 + b2_ref[...], 0.0)

    # ---- conv3 (1x1, BN scale folded) + bias
    y3 = jnp.dot(y2.astype(jnp.bfloat16), w3_ref[...],
                 preferred_element_type=jnp.float32) + b3_ref[...]

    # ---- skip connection (optional 1x1 + BN downsample, scale folded)
    if has_downsample:
        r = jnp.dot(x2d, wd_ref[...],
                    preferred_element_type=jnp.float32) + bd_ref[...]
    else:
        r = x2d.astype(jnp.float32)

    o_ref[...] = jnp.maximum(y3 + r, 0.0).astype(o_ref.dtype)


# ----------------------------------------------------------------------------
# Host-side parameter folding (BN scale into weights, bf16 cast afterwards)
# ----------------------------------------------------------------------------
def _prep_block(params):
    s1, b1 = params["bn1"]
    s2, b2 = params["bn2"]
    s3, b3 = params["bn3"]
    cmid = params["w1"].shape[1]
    prep = {
        "w1": (params["w1"] * s1[None, :]).astype(jnp.bfloat16),
        "b1": b1.reshape(1, -1).astype(jnp.float32),
        "w2": (params["w2"] * s2[None, None, None, :]
               ).reshape(9 * cmid, cmid).astype(jnp.bfloat16),
        "b2": b2.reshape(1, -1).astype(jnp.float32),
        "w3": (params["w3"] * s3[None, :]).astype(jnp.bfloat16),
        "b3": b3.reshape(1, -1).astype(jnp.float32),
    }
    if "wd" in params:
        sd, bd = params["bnd"]
        prep["wd"] = (params["wd"] * sd[None, :]).astype(jnp.bfloat16)
        prep["bd"] = bd.reshape(1, -1).astype(jnp.float32)
    return prep


# ----------------------------------------------------------------------------
# Wrappers
# ----------------------------------------------------------------------------
def residual_block_forward_nhwc(params, x_nhwc):
    """ResidualBlock forward (eval-mode BN). NHWC in, NHWC bf16 out so
    chained blocks avoid NCHW<->NHWC round trips and re-read bf16."""
    stride = params["stride"]
    has_ds = "wd" in params

    n, h, w, cin = x_nhwc.shape
    ho = (h - 1) // stride + 1
    wo = (w - 1) // stride + 1
    rows = ho * wo
    cmid = params["w1"].shape[1]
    cout = params["w3"].shape[1]
    if (stride != 1 or cin != cout) and not has_ds:
        raise ValueError("downsample branch required when stride != 1 or "
                         "in_channels != out_channels")

    # Fold the 1x1-conv stride into the same cheap gather as the bf16 cast:
    # the fused kernel only ever needs x at the strided positions.
    x = x_nhwc
    if stride > 1:
        x = x[:, ::stride, ::stride, :]
    xs = x.astype(jnp.bfloat16).reshape(n, rows, cin)

    p = _prep_block(params)

    def const_spec(shape):
        return pl.BlockSpec(shape, lambda i: (0,) * len(shape))

    in_specs = [
        pl.BlockSpec((None, rows, cin), lambda i: (i, 0, 0)),
        const_spec((cin, cmid)), const_spec((1, cmid)),
        const_spec((9 * cmid, cmid)), const_spec((1, cmid)),
        const_spec((cmid, cout)), const_spec((1, cout)),
    ]
    args = [xs, p["w1"], p["b1"], p["w2"], p["b2"], p["w3"], p["b3"]]
    if has_ds:
        in_specs += [const_spec((cin, cout)), const_spec((1, cout))]
        args += [p["wd"], p["bd"]]

    flops = 2 * n * rows * (cin * cmid + 9 * cmid * cmid + cmid * cout
                            + (cin * cout if has_ds else 0))
    bytes_accessed = int(sum(a.size * a.dtype.itemsize for a in args)
                         + n * rows * cout * 2)

    out = pl.pallas_call(
        functools.partial(_residual_block_kernel, rows=rows, cmid=cmid,
                          ho=ho, wo=wo, has_downsample=has_ds),
        out_shape=jax.ShapeDtypeStruct((n, rows, cout), jnp.bfloat16),
        grid=(n,),
        in_specs=in_specs,
        out_specs=pl.BlockSpec((None, rows, cout), lambda i: (i, 0, 0)),
        scratch_shapes=[pltpu.VMEM((ho + 2, wo + 2, cmid), jnp.bfloat16)],
        compiler_params=pltpu.CompilerParams(
            dimension_semantics=("parallel",),
            vmem_limit_bytes=64 * 1024 * 1024),
        cost_estimate=pl.CostEstimate(flops=flops, transcendentals=0,
                                      bytes_accessed=bytes_accessed),
    )(*args)

    return out.reshape(n, ho, wo, cout)


def residual_block_forward(params, x_nchw):
    """PyTorch-layout API: NCHW float32 in / NCHW float32 out."""
    x = jnp.transpose(x_nchw, (0, 2, 3, 1))
    out = residual_block_forward_nhwc(params, x)
    return jnp.transpose(out, (0, 3, 1, 2)).astype(jnp.float32)


# ----------------------------------------------------------------------------
# Parameter construction (deterministic, synthetic; BN folded to scale/bias)
# ----------------------------------------------------------------------------
def _bn_params(key, c, eps=1e-5):
    k1, k2, k3, k4 = jax.random.split(key, 4)
    gamma = 1.0 + 0.1 * jax.random.normal(k1, (c,), jnp.float32)
    beta = 0.1 * jax.random.normal(k2, (c,), jnp.float32)
    mean = 0.1 * jax.random.normal(k3, (c,), jnp.float32)
    var = 1.0 + 0.1 * jnp.abs(jax.random.normal(k4, (c,), jnp.float32))
    scale = gamma / jnp.sqrt(var + eps)
    bias = beta - mean * scale
    return scale, bias


def make_residual_block_params(key, in_channels, middle_channels, out_channels,
                               stride=1, downsample=False):
    ks = jax.random.split(key, 8)

    def he(k, shape, fan_in):
        return jax.random.normal(k, shape, jnp.float32) * (2.0 / fan_in) ** 0.5

    p = {
        "stride": stride,
        "w1": he(ks[0], (in_channels, middle_channels), in_channels),
        "bn1": _bn_params(ks[1], middle_channels),
        "w2": he(ks[2], (3, 3, middle_channels, middle_channels),
                 9 * middle_channels),
        "bn2": _bn_params(ks[3], middle_channels),
        "w3": he(ks[4], (middle_channels, out_channels), middle_channels),
        "bn3": _bn_params(ks[5], out_channels),
    }
    if downsample:
        p["wd"] = he(ks[6], (in_channels, out_channels), in_channels)
        p["bnd"] = _bn_params(ks[7], out_channels)
    return p


# ----------------------------------------------------------------------------
# Plain-JAX reference (independent path, same bf16 operand rounding)
# ----------------------------------------------------------------------------
def _reference_forward_nhwc(params, x_nhwc):
    hi = lax.Precision.HIGHEST
    f32, bf16 = jnp.float32, jnp.bfloat16
    q = lambda a: a.astype(bf16).astype(f32)       # kernel's bf16 operands
    stride = params["stride"]
    s1, b1 = params["bn1"]
    s2, b2 = params["bn2"]
    s3, b3 = params["bn3"]

    x = x_nhwc
    xs = (x[:, ::stride, ::stride, :] if stride > 1 else x).astype(bf16)

    y = jnp.einsum("nhwc,cd->nhwd", xs.astype(f32),
                   q(params["w1"] * s1[None, :]), precision=hi) + b1
    y = jnp.maximum(y, 0.0).astype(bf16)           # kernel stores y1 as bf16
    w2 = q(params["w2"] * s2[None, None, None, :])
    y = lax.conv_general_dilated(y.astype(f32), w2, (1, 1), "SAME",
                                 dimension_numbers=("NHWC", "HWIO", "NHWC"),
                                 precision=hi) + b2
    y = jnp.maximum(y, 0.0).astype(bf16)           # kernel casts y2 to bf16
    y = jnp.einsum("nhwc,cd->nhwd", y.astype(f32),
                   q(params["w3"] * s3[None, :]), precision=hi) + b3
    if "wd" in params:
        sd, bd = params["bnd"]
        r = jnp.einsum("nhwc,cd->nhwd", xs.astype(f32),
                       q(params["wd"] * sd[None, :]), precision=hi) + bd
    else:
        r = xs.astype(f32)
    return jnp.maximum(y + r, 0.0).astype(bf16)


# ----------------------------------------------------------------------------
if __name__ == "__main__":
    key = jax.random.PRNGKey(0)
    kp1, kp2, kx = jax.random.split(key, 3)

    # Block A: first block of a stage (stride-2 conv1 + 1x1/BN downsample).
    block_a = make_residual_block_params(kp1, in_channels=32,
                                         middle_channels=16, out_channels=64,
                                         stride=2, downsample=True)
    # Block B: identity block (stride 1, no downsample, Cin == Cout).
    block_b = make_residual_block_params(kp2, in_channels=64,
                                         middle_channels=16, out_channels=64,
                                         stride=1, downsample=False)

    x_nchw = jax.random.normal(kx, (2, 32, 16, 16), jnp.float32)     # NCHW

    # Chain the two blocks in NHWC / bf16 (no per-block layout round trips).
    x_nhwc = jnp.transpose(x_nchw, (0, 2, 3, 1))
    out_a = residual_block_forward_nhwc(block_a, x_nhwc)
    out_b = residual_block_forward_nhwc(block_b, out_a)
    out_a, out_b = jax.block_until_ready((out_a, out_b))

    assert out_a.shape == (2, 8, 8, 64) and out_a.dtype == jnp.bfloat16
    assert out_b.shape == (2, 8, 8, 64) and out_b.dtype == jnp.bfloat16
    assert bool(jnp.all(jnp.isfinite(out_a.astype(jnp.float32))))
    assert bool(jnp.all(jnp.isfinite(out_b.astype(jnp.float32))))

    # PyTorch-layout wrapper path (NCHW f32 in/out) matches the NHWC path.
    out_a_nchw = jax.block_until_ready(residual_block_forward(block_a, x_nchw))
    assert out_a_nchw.shape == (2, 64, 8, 8)
    assert bool(jnp.allclose(
        out_a_nchw, jnp.transpose(out_a, (0, 3, 1, 2)).astype(jnp.float32)))

    # Numerics vs. an independent plain-JAX reference (same bf16 rounding).
    ref_a = _reference_forward_nhwc(block_a, x_nhwc)
    ref_b = _reference_forward_nhwc(block_b, out_a)

    def rel_err(a, b):
        a = a.astype(jnp.float32)
        b = b.astype(jnp.float32)
        return float(jnp.max(jnp.abs(a - b) / (1.0 + jnp.abs(b))))

    err_a = rel_err(out_a, ref_a)
    err_b = rel_err(out_b, ref_b)
    assert err_a < 2e-2 and err_b < 2e-2, (err_a, err_b)

    print("KERNEL_OK")
</pallas_src>

<mosaic_0001>
module attributes {stable_mosaic.version = 11 : i64} {
  func.func @_residual_block_kernel(%arg0: i32, %arg1: memref<1x64x32xbf16, #tpu.memory_space<vmem>>, %arg2: memref<32x16xbf16, #tpu.memory_space<vmem>>, %arg3: memref<1x16xf32, #tpu.memory_space<vmem>>, %arg4: memref<144x16xbf16, #tpu.memory_space<vmem>>, %arg5: memref<1x16xf32, #tpu.memory_space<vmem>>, %arg6: memref<16x64xbf16, #tpu.memory_space<vmem>>, %arg7: memref<1x64xf32, #tpu.memory_space<vmem>>, %arg8: memref<32x64xbf16, #tpu.memory_space<vmem>>, %arg9: memref<1x64xf32, #tpu.memory_space<vmem>>, %arg10: memref<1x64x64xbf16, #tpu.memory_space<vmem>>, %arg11: memref<10x10x16xbf16, #tpu.memory_space<vmem>>) attributes {dimension_semantics = [#tpu.dimension_semantics<parallel>], iteration_bounds = array<i64: 2>, scalar_prefetch = 0 : i64, scratch_operands = 1 : i64, tpu.core_type = #tpu.core_type<tc>, window_params = [{transform_indices = @transform_0, window_bounds = array<i64: 1, 64, 32>}, {pipeline_mode = #tpu.pipeline_mode<synchronous>, transform_indices = @transform_1, window_bounds = array<i64: 32, 16>}, {pipeline_mode = #tpu.pipeline_mode<synchronous>, transform_indices = @transform_2, window_bounds = array<i64: 1, 16>}, {pipeline_mode = #tpu.pipeline_mode<synchronous>, transform_indices = @transform_3, window_bounds = array<i64: 144, 16>}, {pipeline_mode = #tpu.pipeline_mode<synchronous>, transform_indices = @transform_4, window_bounds = array<i64: 1, 16>}, {pipeline_mode = #tpu.pipeline_mode<synchronous>, transform_indices = @transform_5, window_bounds = array<i64: 16, 64>}, {pipeline_mode = #tpu.pipeline_mode<synchronous>, transform_indices = @transform_6, window_bounds = array<i64: 1, 64>}, {pipeline_mode = #tpu.pipeline_mode<synchronous>, transform_indices = @transform_7, window_bounds = array<i64: 32, 64>}, {pipeline_mode = #tpu.pipeline_mode<synchronous>, transform_indices = @transform_8, window_bounds = array<i64: 1, 64>}, {transform_indices = @transform_9, window_bounds = array<i64: 1, 64, 64>}]} {
    %c0 = arith.constant 0 : index
    %c0_0 = arith.constant 0 : index
    %c0_1 = arith.constant 0 : index
    %0 = vector.load %arg1[%c0, %c0_0, %c0_1] : memref<1x64x32xbf16, #tpu.memory_space<vmem>>, vector<1x64x32xbf16>
    %1 = vector.shape_cast %0 : vector<1x64x32xbf16> to vector<64x32xbf16>
    %c0_2 = arith.constant 0 : index
    %c0_3 = arith.constant 0 : index
    %2 = vector.load %arg2[%c0_2, %c0_3] : memref<32x16xbf16, #tpu.memory_space<vmem>>, vector<32x16xbf16>
    %cst = arith.constant dense<0.000000e+00> : vector<64x16xf32>
    %3 = tpu.matmul %1, %2, %cst {dimension_numbers = #tpu.dot_dimension_numbers<[1], [0], [0], [1], [0, 0, 1, 1], [], []>} : vector<64x32xbf16>, vector<32x16xbf16>, vector<64x16xf32> -> vector<64x16xf32>
    %c0_4 = arith.constant 0 : index
    %c0_5 = arith.constant 0 : index
    %4 = vector.load %arg3[%c0_4, %c0_5] : memref<1x16xf32, #tpu.memory_space<vmem>>, vector<1x16xf32>
    %5 = vector.broadcast %4 : vector<1x16xf32> to vector<64x16xf32>
    %6 = arith.addf %3, %5 : vector<64x16xf32>
    %cst_6 = arith.constant 0.000000e+00 : f32
    %7 = vector.broadcast %cst_6 : f32 to vector<64x16xf32>
    %8 = arith.maximumf %6, %7 : vector<64x16xf32>
    %cst_7 = arith.constant 0.000000e+00 : bf16
    %9 = vector.broadcast %cst_7 : bf16 to vector<1x10x16xbf16>
    %c0_8 = arith.constant 0 : index
    %c0_9 = arith.constant 0 : index
    %c0_10 = arith.constant 0 : index
    %10 = vector.load %arg11[%c0_8, %c0_9, %c0_10] : memref<10x10x16xbf16, #tpu.memory_space<vmem>>, vector<1x10x16xbf16>
    tpu.vector_store %arg11[%c0_8, %c0_9, %c0_10], %9 {strides = array<i32>} : memref<10x10x16xbf16, #tpu.memory_space<vmem>>, vector<1x10x16xbf16>,
    %cst_11 = arith.constant 0.000000e+00 : bf16
    %11 = vector.broadcast %cst_11 : bf16 to vector<1x10x16xbf16>
    %c9 = arith.constant 9 : index
    %c0_12 = arith.constant 0 : index
    %c0_13 = arith.constant 0 : index
    %12 = vector.load %arg11[%c9, %c0_12, %c0_13] : memref<10x10x16xbf16, #tpu.memory_space<vmem>>, vector<1x10x16xbf16>
    tpu.vector_store %arg11[%c9, %c0_12, %c0_13], %11 {strides = array<i32>} : memref<10x10x16xbf16, #tpu.memory_space<vmem>>, vector<1x10x16xbf16>,
    %cst_14 = arith.constant 0.000000e+00 : bf16
    %13 = vector.broadcast %cst_14 : bf16 to vector<10x1x16xbf16>
    %c0_15 = arith.constant 0 : index
    %c0_16 = arith.constant 0 : index
    %c0_17 = arith.constant 0 : index
    %14 = vector.load %arg11[%c0_15, %c0_16, %c0_17] : memref<10x10x16xbf16, #tpu.memory_space<vmem>>, vector<10x1x16xbf16>
    tpu.vector_store %arg11[%c0_15, %c0_16, %c0_17], %13 {strides = array<i32>} : memref<10x10x16xbf16, #tpu.memory_space<vmem>>, vector<10x1x16xbf16>,
    %cst_18 = arith.constant 0.000000e+00 : bf16
    %15 = vector.broadcast %cst_18 : bf16 to vector<10x1x16xbf16>
    %c0_19 = arith.constant 0 : index
    %c9_20 = arith.constant 9 : index
    %c0_21 = arith.constant 0 : index
    %16 = vector.load %arg11[%c0_19, %c9_20, %c0_21] : memref<10x10x16xbf16, #tpu.memory_space<vmem>>, vector<10x1x16xbf16>
    tpu.vector_store %arg11[%c0_19, %c9_20, %c0_21], %15 {strides = array<i32>} : memref<10x10x16xbf16, #tpu.memory_space<vmem>>, vector<10x1x16xbf16>,
    %17 = vector.shape_cast %8 : vector<64x16xf32> to vector<8x8x16xf32>
    %18 = arith.truncf %17 : vector<8x8x16xf32> to vector<8x8x16xbf16>
    %c1 = arith.constant 1 : index
    %c1_22 = arith.constant 1 : index
    %c0_23 = arith.constant 0 : index
    %19 = vector.load %arg11[%c1, %c1_22, %c0_23] : memref<10x10x16xbf16, #tpu.memory_space<vmem>>, vector<8x8x16xbf16>
    tpu.vector_store %arg11[%c1, %c1_22, %c0_23], %18 {strides = array<i32>} : memref<10x10x16xbf16, #tpu.memory_space<vmem>>, vector<8x8x16xbf16>,
    %c0_24 = arith.constant 0 : index
    %c0_25 = arith.constant 0 : index
    %c0_26 = arith.constant 0 : index
    %20 = vector.load %arg11[%c0_24, %c0_25, %c0_26] : memref<10x10x16xbf16, #tpu.memory_space<vmem>>, vector<8x8x16xbf16>
    %21 = vector.shape_cast %20 : vector<8x8x16xbf16> to vector<64x16xbf16>
    %c0_27 = arith.constant 0 : index
    %c1_28 = arith.constant 1 : index
    %c0_29 = arith.constant 0 : index
    %22 = vector.load %arg11[%c0_27, %c1_28, %c0_29] : memref<10x10x16xbf16, #tpu.memory_space<vmem>>, vector<8x8x16xbf16>
    %23 = vector.shape_cast %22 : vector<8x8x16xbf16> to vector<64x16xbf16>
    %c0_30 = arith.constant 0 : index
    %c2 = arith.constant 2 : index
    %c0_31 = arith.constant 0 : index
    %24 = vector.load %arg11[%c0_30, %c2, %c0_31] : memref<10x10x16xbf16, #tpu.memory_space<vmem>>, vector<8x8x16xbf16>
    %25 = vector.shape_cast %24 : vector<8x8x16xbf16> to vector<64x16xbf16>
    %c1_32 = arith.constant 1 : index
    %c0_33 = arith.constant 0 : index
    %c0_34 = arith.constant 0 : index
    %26 = vector.load %arg11[%c1_32, %c0_33, %c0_34] : memref<10x10x16xbf16, #tpu.memory_space<vmem>>, vector<8x8x16xbf16>
    %27 = vector.shape_cast %26 : vector<8x8x16xbf16> to vector<64x16xbf16>
    %c1_35 = arith.constant 1 : index
    %c1_36 = arith.constant 1 : index
    %c0_37 = arith.constant 0 : index
    %28 = vector.load %arg11[%c1_35, %c1_36, %c0_37] : memref<10x10x16xbf16, #tpu.memory_space<vmem>>, vector<8x8x16xbf16>
    %29 = vector.shape_cast %28 : vector<8x8x16xbf16> to vector<64x16xbf16>
    %c1_38 = arith.constant 1 : index
    %c2_39 = arith.constant 2 : index
    %c0_40 = arith.constant 0 : index
    %30 = vector.load %arg11[%c1_38, %c2_39, %c0_40] : memref<10x10x16xbf16, #tpu.memory_space<vmem>>, vector<8x8x16xbf16>
    %31 = vector.shape_cast %30 : vector<8x8x16xbf16> to vector<64x16xbf16>
    %c2_41 = arith.constant 2 : index
    %c0_42 = arith.constant 0 : index
    %c0_43 = arith.constant 0 : index
    %32 = vector.load %arg11[%c2_41, %c0_42, %c0_43] : memref<10x10x16xbf16, #tpu.memory_space<vmem>>, vector<8x8x16xbf16>
    %33 = vector.shape_cast %32 : vector<8x8x16xbf16> to vector<64x16xbf16>
    %c2_44 = arith.constant 2 : index
    %c1_45 = arith.constant 1 : index
    %c0_46 = arith.constant 0 : index
    %34 = vector.load %arg11[%c2_44, %c1_45, %c0_46] : memref<10x10x16xbf16, #tpu.memory_space<vmem>>, vector<8x8x16xbf16>
    %35 = vector.shape_cast %34 : vector<8x8x16xbf16> to vector<64x16xbf16>
    %c2_47 = arith.constant 2 : index
    %c2_48 = arith.constant 2 : index
    %c0_49 = arith.constant 0 : index
    %36 = vector.load %arg11[%c2_47, %c2_48, %c0_49] : memref<10x10x16xbf16, #tpu.memory_space<vmem>>, vector<8x8x16xbf16>
    %37 = vector.shape_cast %36 : vector<8x8x16xbf16> to vector<64x16xbf16>
    %38 = tpu.concatenate %21, %23, %25, %27, %29, %31, %33, %35, %37 in 1 : vector<64x16xbf16>, vector<64x16xbf16>, vector<64x16xbf16>, vector<64x16xbf16>, vector<64x16xbf16>, vector<64x16xbf16>, vector<64x16xbf16>, vector<64x16xbf16>, vector<64x16xbf16> -> vector<64x144xbf16>
    %c0_50 = arith.constant 0 : index
    %c0_51 = arith.constant 0 : index
    %39 = vector.load %arg4[%c0_50, %c0_51] : memref<144x16xbf16, #tpu.memory_space<vmem>>, vector<144x16xbf16>
    %cst_52 = arith.constant dense<0.000000e+00> : vector<64x16xf32>
    %40 = tpu.matmul %38, %39, %cst_52 {dimension_numbers = #tpu.dot_dimension_numbers<[1], [0], [0], [1], [0, 0, 1, 1], [], []>} : vector<64x144xbf16>, vector<144x16xbf16>, vector<64x16xf32> -> vector<64x16xf32>
    %c0_53 = arith.constant 0 : index
    %c0_54 = arith.constant 0 : index
    %41 = vector.load %arg5[%c0_53, %c0_54] : memref<1x16xf32, #tpu.memory_space<vmem>>, vector<1x16xf32>
    %42 = vector.broadcast %41 : vector<1x16xf32> to vector<64x16xf32>
    %43 = arith.addf %40, %42 : vector<64x16xf32>
    %cst_55 = arith.constant 0.000000e+00 : f32
    %44 = vector.broadcast %cst_55 : f32 to vector<64x16xf32>
    %45 = arith.maximumf %43, %44 : vector<64x16xf32>
    %46 = arith.truncf %45 : vector<64x16xf32> to vector<64x16xbf16>
    %c0_56 = arith.constant 0 : index
    %c0_57 = arith.constant 0 : index
    %47 = vector.load %arg6[%c0_56, %c0_57] : memref<16x64xbf16, #tpu.memory_space<vmem>>, vector<16x64xbf16>
    %cst_58 = arith.constant dense<0.000000e+00> : vector<64x64xf32>
    %48 = tpu.matmul %46, %47, %cst_58 {dimension_numbers = #tpu.dot_dimension_numbers<[1], [0], [0], [1], [0, 0, 1, 1], [], []>} : vector<64x16xbf16>, vector<16x64xbf16>, vector<64x64xf32> -> vector<64x64xf32>
    %c0_59 = arith.constant 0 : index
    %c0_60 = arith.constant 0 : index
    %49 = vector.load %arg7[%c0_59, %c0_60] : memref<1x64xf32, #tpu.memory_space<vmem>>, vector<1x64xf32>
    %50 = vector.broadcast %49 : vector<1x64xf32> to vector<64x64xf32>
    %51 = arith.addf %48, %50 : vector<64x64xf32>
    %c0_61 = arith.constant 0 : index
    %c0_62 = arith.constant 0 : index
    %52 = vector.load %arg8[%c0_61, %c0_62] : memref<32x64xbf16, #tpu.memory_space<vmem>>, vector<32x64xbf16>
    %cst_63 = arith.constant dense<0.000000e+00> : vector<64x64xf32>
    %53 = tpu.matmul %1, %52, %cst_63 {dimension_numbers = #tpu.dot_dimension_numbers<[1], [0], [0], [1], [0, 0, 1, 1], [], []>} : vector<64x32xbf16>, vector<32x64xbf16>, vector<64x64xf32> -> vector<64x64xf32>
    %c0_64 = arith.constant 0 : index
    %c0_65 = arith.constant 0 : index
    %54 = vector.load %arg9[%c0_64, %c0_65] : memref<1x64xf32, #tpu.memory_space<vmem>>, vector<1x64xf32>
    %55 = vector.broadcast %54 : vector<1x64xf32> to vector<64x64xf32>
    %56 = arith.addf %53, %55 : vector<64x64xf32>
    %57 = arith.addf %51, %56 : vector<64x64xf32>
    %cst_66 = arith.constant 0.000000e+00 : f32
    %58 = vector.broadcast %cst_66 : f32 to vector<64x64xf32>
    %59 = arith.maximumf %57, %58 : vector<64x64xf32>
    %60 = arith.truncf %59 : vector<64x64xf32> to vector<64x64xbf16>
    %c0_67 = arith.constant 0 : index
    %c0_68 = arith.constant 0 : index
    %c0_69 = arith.constant 0 : index
    %61 = vector.load %arg10[%c0_67, %c0_68, %c0_69] : memref<1x64x64xbf16, #tpu.memory_space<vmem>>, vector<1x64x64xbf16>
    %62 = vector.shape_cast %61 : vector<1x64x64xbf16> to vector<64x64xbf16>
    %63 = vector.shape_cast %60 : vector<64x64xbf16> to vector<1x64x64xbf16>
    tpu.vector_store %arg10[%c0_67, %c0_68, %c0_69], %63 {strides = array<i32>} : memref<1x64x64xbf16, #tpu.memory_space<vmem>>, vector<1x64x64xbf16>,
    return
  }
  func.func @transform_0(%arg0: i32) -> (i32, i32, i32) {
    %c0_i32 = arith.constant 0 : i32
    %c0_i32_0 = arith.constant 0 : i32
    %c0_i32_1 = arith.constant 0 : i32
    return %arg0, %c0_i32, %c0_i32_0 : i32, i32, i32
  }
  func.func @transform_1(%arg0: i32) -> (i32, i32) {
    %c0_i32 = arith.constant 0 : i32
    %c0_i32_0 = arith.constant 0 : i32
    %c0_i32_1 = arith.constant 0 : i32
    return %c0_i32, %c0_i32_0 : i32, i32
  }
  func.func @transform_2(%arg0: i32) -> (i32, i32) {
    %c0_i32 = arith.constant 0 : i32
    %c0_i32_0 = arith.constant 0 : i32
    %c0_i32_1 = arith.constant 0 : i32
    return %c0_i32, %c0_i32_0 : i32, i32
  }
  func.func @transform_3(%arg0: i32) -> (i32, i32) {
    %c0_i32 = arith.constant 0 : i32
    %c0_i32_0 = arith.constant 0 : i32
    %c0_i32_1 = arith.constant 0 : i32
    return %c0_i32, %c0_i32_0 : i32, i32
  }
  func.func @transform_4(%arg0: i32) -> (i32, i32) {
    %c0_i32 = arith.constant 0 : i32
    %c0_i32_0 = arith.constant 0 : i32
    %c0_i32_1 = arith.constant 0 : i32
    return %c0_i32, %c0_i32_0 : i32, i32
  }
  func.func @transform_5(%arg0: i32) -> (i32, i32) {
    %c0_i32 = arith.constant 0 : i32
    %c0_i32_0 = arith.constant 0 : i32
    %c0_i32_1 = arith.constant 0 : i32
    return %c0_i32, %c0_i32_0 : i32, i32
  }
  func.func @transform_6(%arg0: i32) -> (i32, i32) {
    %c0_i32 = arith.constant 0 : i32
    %c0_i32_0 = arith.constant 0 : i32
    %c0_i32_1 = arith.constant 0 : i32
    return %c0_i32, %c0_i32_0 : i32, i32
  }
  func.func @transform_7(%arg0: i32) -> (i32, i32) {
    %c0_i32 = arith.constant 0 : i32
    %c0_i32_0 = arith.constant 0 : i32
    %c0_i32_1 = arith.constant 0 : i32
    return %c0_i32, %c0_i32_0 : i32, i32
  }
  func.func @transform_8(%arg0: i32) -> (i32, i32) {
    %c0_i32 = arith.constant 0 : i32
    %c0_i32_0 = arith.constant 0 : i32
    %c0_i32_1 = arith.constant 0 : i32
    return %c0_i32, %c0_i32_0 : i32, i32
  }
  func.func @transform_9(%arg0: i32) -> (i32, i32, i32) {
    %c0_i32 = arith.constant 0 : i32
    %c0_i32_0 = arith.constant 0 : i32
    %c0_i32_1 = arith.constant 0 : i32
    return %arg0, %c0_i32, %c0_i32_0 : i32, i32, i32
  }
}

</mosaic_0001>

<llo_original>
// kernel: tpu_custom_call.1
$region0: #{tpu_custom_call.1}
  #allocation0 [shape = 'u32[]', space=smem, size = 0x4, offset = 0x4, fixed_abs, tag = 'smem constant byte address 0x4 - core index']
  #allocation1 [shape = 'u32[144,128]{1,0:T(1,128)}', space=vmem, size = 0x12000, scoped, tag = 'internal scratch']
  #allocation2 [shape = 'bf16[10,10,16]{2,1,0:T(8,128)(2,1)}', space=vmem, size = 0xa000, scoped, tag = 'scratch operand']
  %s0 = inlined_call_operand.hbm [shape: bf16[2,64,32], index: 0, kind: input, shape index: {}]
  %s1 = inlined_call_operand.hbm [shape: bf16[32,16], index: 1, kind: input, shape index: {}]
  %s2 = inlined_call_operand.hbm [shape: f32[1,16], index: 2, kind: input, shape index: {}]
  %s3 = inlined_call_operand.hbm [shape: bf16[144,16], index: 3, kind: input, shape index: {}]
  %s4 = inlined_call_operand.hbm [shape: f32[1,16], index: 4, kind: input, shape index: {}]
  %s5 = inlined_call_operand.hbm [shape: bf16[16,64], index: 5, kind: input, shape index: {}]
  %s6 = inlined_call_operand.hbm [shape: f32[1,64], index: 6, kind: input, shape index: {}]
  %s7 = inlined_call_operand.hbm [shape: bf16[32,64], index: 7, kind: input, shape index: {}]
  %s8 = inlined_call_operand.hbm [shape: f32[1,64], index: 8, kind: input, shape index: {}]
  %s9 = inlined_call_operand.hbm [shape: bf16[2,64,64], index: 9, kind: output, shape index: {}]
  %s10 = sld [smem:[#allocation0]]
  $region105: #{tpu_custom_call.1} parent=0
    _
  %s12 = ssub.s32 1, %s10
  %s13 = scalar_select 0, %s12, %s10
  $region1: #{tpu_custom_call.1} parent=0
    #allocation3 [shape = 'u8[32768]{0}', space=vmem, size = 0x8000, scoped, tag = 'input window, operand 0']
    #allocation4 [shape = 's32[2]{0}', space=sflag, size = 0x8, scoped, tag = 'scoped memory for tpu_custom_call.1']
    #allocation5 [shape = 's32[2]{0}', space=sflag, size = 0x8, scoped, tag = 'scoped memory for tpu_custom_call.1']
    #allocation6 [shape = 'u8[8192]{0}', space=vmem, size = 0x2000, scoped, tag = 'input window, operand 1, single buffered']
    #allocation7 [shape = 's32[1]{0}', space=sflag, size = 0x4, scoped, tag = 'scoped memory for tpu_custom_call.1']
    #allocation8 [shape = 'u8[512]{0}', space=vmem, size = 0x400, scoped, tag = 'input window, operand 2, single buffered']
    #allocation9 [shape = 'u8[36864]{0}', space=vmem, size = 0x9000, scoped, tag = 'input window, operand 3, single buffered']
    #allocation10 [shape = 's32[1]{0}', space=sflag, size = 0x4, scoped, tag = 'scoped memory for tpu_custom_call.1']
    #allocation11 [shape = 'u8[512]{0}', space=vmem, size = 0x400, scoped, tag = 'input window, operand 4, single buffered']
    #allocation12 [shape = 'u8[4096]{0}', space=vmem, size = 0x1000, scoped, tag = 'input window, operand 5, single buffered']
    #allocation13 [shape = 's32[1]{0}', space=sflag, size = 0x4, scoped, tag = 'scoped memory for tpu_custom_call.1']
    #allocation14 [shape = 'u8[512]{0}', space=vmem, size = 0x400, scoped, tag = 'input window, operand 6, single buffered']
    #allocation15 [shape = 'u8[8192]{0}', space=vmem, size = 0x2000, scoped, tag = 'input window, operand 7, single buffered']
    #allocation16 [shape = 's32[1]{0}', space=sflag, size = 0x4, scoped, tag = 'scoped memory for tpu_custom_call.1']
    #allocation17 [shape = 'u8[512]{0}', space=vmem, size = 0x400, scoped, tag = 'input window, operand 8, single buffered']
    #allocation18 [shape = 'u8[32768]{0}', space=vmem, size = 0x8000, scoped, tag = 'output window, operand 0']
    %14 = vsyncpa [#allocation4], 0
    %s15 = scalar_lea.sflag [#allocation4], 1
    %16 = vsyncpa %s15, 0
    %17 = vsyncpa [#allocation7], 0
    %18 = vsyncpa [#allocation10], 0
    %19 = vsyncpa [#allocation13], 0
    %20 = vsyncpa [#allocation16], 0
    %21 = vsyncpa [#allocation5], 0
    %s22 = scalar_lea.sflag [#allocation5], 1
    %23 = vsyncpa %s22, 0
    loop: start=0, step=1, limit=4
    $region2: #{tpu_custom_call.1} parent=1 // loop_pre_header
      _
    $region3: #{tpu_custom_call.1} parent=1 // loop_header
      %s25 = sphi 0, %s29
      %p26 = scmp.ge.s32.totalorder %s25, 4
      %s35 = sphi 0, %s37
      %s38 = sphi 0, %s35
      %s39 = sphi 0, %s38
      %s55 = sphi 0, %s39
      %s59 = sphi 0, %s59
      %s61 = sphi 0, %s59
      %s62 = sphi 0, %s61
      %s76 = sphi 0, %s62
      %s80 = sphi 0, %s80
      %s82 = sphi 0, %s80
      %s83 = sphi 0, %s82
      %s97 = sphi 0, %s83
      %s101 = sphi 0, %s101
      %s103 = sphi 0, %s101
      %s104 = sphi 0, %s103
      %s118 = sphi 0, %s104
      %s122 = sphi 0, %s122
      %s124 = sphi 0, %s122
      %s125 = sphi 0, %s124
      %s139 = sphi 0, %s125
      %s143 = sphi 0, %s143
      %s145 = sphi 0, %s143
      %s146 = sphi 0, %s145
      %s160 = sphi 0, %s146
      %s164 = sphi 0, %s164
      %s166 = sphi 0, %s164
      %s167 = sphi 0, %s166
      %s181 = sphi 0, %s167
      %s185 = sphi 0, %s185
      %s187 = sphi 0, %s185
      %s188 = sphi 0, %s187
      %s202 = sphi 0, %s188
      %s206 = sphi 0, %s206
      %s208 = sphi 0, %s206
      %s209 = sphi 0, %s208
      %s223 = sphi 0, %s209
      %s229 = sphi 0, %s231
      %s232 = sphi 0, %s229
      %s233 = sphi 0, %s232
      %s249 = sphi 0, %s233
    $region4: #{tpu_custom_call.1} parent=1 // loop_header_branch
      %28 = sbr.rel (%p26) target = $region8
    $region5: #{tpu_custom_call.1} parent=1 // loop_body
      %s30 = ssub.s32 %s25, 1
      %s31 = ssub.s32 %s25, 2
      %s32 = sadd.s32 %s25, 1
      %s33 = ssub.s32 %s25, %s32
      %p34 = scmp.eq.s32.totalorder %s33, 0
      %s36 = sadd.s32 %s35, 1
      %s37 = scalar_select %p34, %s35, %s36
      %p40 = pneg %p34
      %p41 = scmp.eq.s32.totalorder %s25, 1
      %p42 = por %p40, %p41
      %p43 = scmp.ne.s32.totalorder %s35, %s38
      %p44 = scmp.eq.s32.totalorder %s25, 0
      %p45 = por %p43, %p44
      %p46 = scmp.ne.s32.totalorder %s35, %s38
      %p47 = scmp.eq.s32.totalorder %s30, 1
      %p48 = por %p46, %p47
      %p49 = scmp.ne.s32.totalorder %s38, %s39
      %p50 = scmp.eq.s32.totalorder %s30, 0
      %p51 = por %p49, %p50
      %p52 = scmp.ne.s32.totalorder %s38, %s39
      %p53 = scmp.eq.s32.totalorder %s31, 1
      %p54 = por %p52, %p53
      %p56 = scmp.ne.s32.totalorder %s39, %s55
      %p57 = scmp.eq.s32.totalorder %s31, 0
      %p58 = por %p56, %p57
      %s60 = sadd.s32 %s59, 1
      %p63 = scmp.eq.s32.totalorder %s25, 1
      %p64 = scmp.ne.s32.totalorder %s59, %s61
      %p65 = scmp.eq.s32.totalorder %s25, 0
      %p66 = por %p64, %p65
      %p67 = scmp.ne.s32.totalorder %s59, %s61
      %p68 = scmp.eq.s32.totalorder %s30, 1
      %p69 = por %p67, %p68
      %p70 = scmp.ne.s32.totalorder %s61, %s62
      %p71 = scmp.eq.s32.totalorder %s30, 0
      %p72 = por %p70, %p71
      %p73 = scmp.ne.s32.totalorder %s61, %s62
      %p74 = scmp.eq.s32.totalorder %s31, 1
      %p75 = por %p73, %p74
      %p77 = scmp.ne.s32.totalorder %s62, %s76
      %p78 = scmp.eq.s32.totalorder %s31, 0
      %p79 = por %p77, %p78
      %s81 = sadd.s32 %s80, 1
      %p84 = scmp.eq.s32.totalorder %s25, 1
      %p85 = scmp.ne.s32.totalorder %s80, %s82
      %p86 = scmp.eq.s32.totalorder %s25, 0
      %p87 = por %p85, %p86
      %p88 = scmp.ne.s32.totalorder %s80, %s82
      %p89 = scmp.eq.s32.totalorder %s30, 1
      %p90 = por %p88, %p89
      %p91 = scmp.ne.s32.totalorder %s82, %s83
      %p92 = scmp.eq.s32.totalorder %s30, 0
      %p93 = por %p91, %p92
      %p94 = scmp.ne.s32.totalorder %s82, %s83
      %p95 = scmp.eq.s32.totalorder %s31, 1
      %p96 = por %p94, %p95
      %p98 = scmp.ne.s32.totalorder %s83, %s97
      %p99 = scmp.eq.s32.totalorder %s31, 0
      %p100 = por %p98, %p99
      %s102 = sadd.s32 %s101, 1
      %p105 = scmp.eq.s32.totalorder %s25, 1
      %p106 = scmp.ne.s32.totalorder %s101, %s103
      %p107 = scmp.eq.s32.totalorder %s25, 0
      %p108 = por %p106, %p107
      %p109 = scmp.ne.s32.totalorder %s101, %s103
      %p110 = scmp.eq.s32.totalorder %s30, 1
      %p111 = por %p109, %p110
      %p112 = scmp.ne.s32.totalorder %s103, %s104
      %p113 = scmp.eq.s32.totalorder %s30, 0
      %p114 = por %p112, %p113
      %p115 = scmp.ne.s32.totalorder %s103, %s104
      %p116 = scmp.eq.s32.totalorder %s31, 1
      %p117 = por %p115, %p116
      %p119 = scmp.ne.s32.totalorder %s104, %s118
      %p120 = scmp.eq.s32.totalorder %s31, 0
      %p121 = por %p119, %p120
      %s123 = sadd.s32 %s122, 1
      %p126 = scmp.eq.s32.totalorder %s25, 1
      %p127 = scmp.ne.s32.totalorder %s122, %s124
      %p128 = scmp.eq.s32.totalorder %s25, 0
      %p129 = por %p127, %p128
      %p130 = scmp.ne.s32.totalorder %s122, %s124
      %p131 = scmp.eq.s32.totalorder %s30, 1
      %p132 = por %p130, %p131
      %p133 = scmp.ne.s32.totalorder %s124, %s125
      %p134 = scmp.eq.s32.totalorder %s30, 0
      %p135 = por %p133, %p134
      %p136 = scmp.ne.s32.totalorder %s124, %s125
      %p137 = scmp.eq.s32.totalorder %s31, 1
      %p138 = por %p136, %p137
      %p140 = scmp.ne.s32.totalorder %s125, %s139
      %p141 = scmp.eq.s32.totalorder %s31, 0
      %p142 = por %p140, %p141
      %s144 = sadd.s32 %s143, 1
      %p147 = scmp.eq.s32.totalorder %s25, 1
      %p148 = scmp.ne.s32.totalorder %s143, %s145
      %p149 = scmp.eq.s32.totalorder %s25, 0
      %p150 = por %p148, %p149
      %p151 = scmp.ne.s32.totalorder %s143, %s145
      %p152 = scmp.eq.s32.totalorder %s30, 1
      %p153 = por %p151, %p152
      %p154 = scmp.ne.s32.totalorder %s145, %s146
      %p155 = scmp.eq.s32.totalorder %s30, 0
      %p156 = por %p154, %p155
      %p157 = scmp.ne.s32.totalorder %s145, %s146
      %p158 = scmp.eq.s32.totalorder %s31, 1
      %p159 = por %p157, %p158
      %p161 = scmp.ne.s32.totalorder %s146, %s160
      %p162 = scmp.eq.s32.totalorder %s31, 0
      %p163 = por %p161, %p162
      %s165 = sadd.s32 %s164, 1
      %p168 = scmp.eq.s32.totalorder %s25, 1
      %p169 = scmp.ne.s32.totalorder %s164, %s166
      %p170 = scmp.eq.s32.totalorder %s25, 0
      %p171 = por %p169, %p170
      %p172 = scmp.ne.s32.totalorder %s164, %s166
      %p173 = scmp.eq.s32.totalorder %s30, 1
      %p174 = por %p172, %p173
      %p175 = scmp.ne.s32.totalorder %s166, %s167
      %p176 = scmp.eq.s32.totalorder %s30, 0
      %p177 = por %p175, %p176
      %p178 = scmp.ne.s32.totalorder %s166, %s167
      %p179 = scmp.eq.s32.totalorder %s31, 1
      %p180 = por %p178, %p179
      %p182 = scmp.ne.s32.totalorder %s167, %s181
      %p183 = scmp.eq.s32.totalorder %s31, 0
      %p184 = por %p182, %p183
      %s186 = sadd.s32 %s185, 1
      %p189 = scmp.eq.s32.totalorder %s25, 1
      %p190 = scmp.ne.s32.totalorder %s185, %s187
      %p191 = scmp.eq.s32.totalorder %s25, 0
      %p192 = por %p190, %p191
      %p193 = scmp.ne.s32.totalorder %s185, %s187
      %p194 = scmp.eq.s32.totalorder %s30, 1
      %p195 = por %p193, %p194
      %p196 = scmp.ne.s32.totalorder %s187, %s188
      %p197 = scmp.eq.s32.totalorder %s30, 0
      %p198 = por %p196, %p197
      %p199 = scmp.ne.s32.totalorder %s187, %s188
      %p200 = scmp.eq.s32.totalorder %s31, 1
      %p201 = por %p199, %p200
      %p203 = scmp.ne.s32.totalorder %s188, %s202
      %p204 = scmp.eq.s32.totalorder %s31, 0
      %p205 = por %p203, %p204
      %s207 = sadd.s32 %s206, 1
      %p210 = scmp.eq.s32.totalorder %s25, 1
      %p211 = scmp.ne.s32.totalorder %s206, %s208
      %p212 = scmp.eq.s32.totalorder %s25, 0
      %p213 = por %p211, %p212
      %p214 = scmp.ne.s32.totalorder %s206, %s208
      %p215 = scmp.eq.s32.totalorder %s30, 1
      %p216 = por %p214, %p215
      %p217 = scmp.ne.s32.totalorder %s208, %s209
      %p218 = scmp.eq.s32.totalorder %s30, 0
      %p219 = por %p217, %p218
      %p220 = scmp.ne.s32.totalorder %s208, %s209
      %p221 = scmp.eq.s32.totalorder %s31, 1
      %p222 = por %p220, %p221
      %p224 = scmp.ne.s32.totalorder %s209, %s223
      %p225 = scmp.eq.s32.totalorder %s31, 0
      %p226 = por %p224, %p225
      %s227 = ssub.s32 %s25, %s32
      %p228 = scmp.eq.s32.totalorder %s227, 0
      %s230 = sadd.s32 %s229, 1
      %s231 = scalar_select %p228, %s229, %s230
      %p234 = pneg %p228
      %p235 = scmp.eq.s32.totalorder %s25, 1
      %p236 = por %p234, %p235
      %p237 = scmp.ne.s32.totalorder %s229, %s232
      %p238 = scmp.eq.s32.totalorder %s25, 0
      %p239 = por %p237, %p238
      %p240 = scmp.ne.s32.totalorder %s229, %s232
      %p241 = scmp.eq.s32.totalorder %s30, 1
      %p242 = por %p240, %p241
      %p243 = scmp.ne.s32.totalorder %s232, %s233
      %p244 = scmp.eq.s32.totalorder %s30, 0
      %p245 = por %p243, %p244
      %p246 = scmp.ne.s32.totalorder %s232, %s233
      %p247 = scmp.eq.s32.totalorder %s31, 1
      %p248 = por %p246, %p247
      %p250 = scmp.ne.s32.totalorder %s233, %s249
      %p251 = scmp.eq.s32.totalorder %s31, 0
      %p252 = por %p250, %p251
      %p253 = scmp.le.s32.totalorder 1, %s25
      %p254 = scmp.lt.s32.totalorder %s25, 3
      %p255 = pnand %p253, %p254
      %p256 = pneg %p255
      // Predicated region
      $region9: #{tpu_custom_call.1} parent=5 // pred_check
        _
      $region10: #{tpu_custom_call.1} parent=5 // pred_check_branch
        %258 = sbr.rel (%p255) target = $region12
      $region11: #{tpu_custom_call.1} parent=5 // pred_region
        %s259 = ssub.s32 %s25, 1
        // Predicated region
        $region13: #{tpu_custom_call.1} parent=11 // pred_check
          %p260 = pneg %p72
        $region14: #{tpu_custom_call.1} parent=11 // pred_check_branch
          %262 = sbr.rel (%p260) target = $region16
        $region15: #{tpu_custom_call.1} parent=11 // pred_region
          %s264 = ssub.s32 256, 256
          %265 = vsyncadd [#allocation7], %s264
          %s266 = sshll.u32 [#allocation6], 4
          %s267 = int_to_ptr.vmem [resolvable:$true] %s266
          %272 = dma.hbm_to_vmem [thread:$0]  %s1, 256, %s267, [#allocation7], 64, 64, 4
        $region16: #{tpu_custom_call.1} parent=11 // pred_fallthru
          _
        // Predicated region
        $region17: #{tpu_custom_call.1} parent=11 // pred_check
          %p273 = pneg %p93
        $region18: #{tpu_custom_call.1} parent=11 // pred_check_branch
          %275 = sbr.rel (%p273) target = $region20
        $region19: #{tpu_custom_call.1} parent=11 // pred_region
          %s277 = ssub.s32 16, 16
          %278 = vsyncadd [#allocation7], %s277
          %s280 = sshll.u32 [#allocation8], 4
          %s281 = int_to_ptr.vmem [resolvable:$true] %s280
          %283 = dma.hbm_to_vmem [thread:$0]  %s2, 16, %s281, [#allocation7]
        $region20: #{tpu_custom_call.1} parent=11 // pred_fallthru
          _
        // Predicated region
        $region21: #{tpu_custom_call.1} parent=11 // pred_check
          %p284 = pneg %p114
        $region22: #{tpu_custom_call.1} parent=11 // pred_check_branch
          %286 = sbr.rel (%p284) target = $region24
        $region23: #{tpu_custom_call.1} parent=11 // pred_region
          %s288 = ssub.s32 1152, 1152
          %289 = vsyncadd [#allocation10], %s288
          %s290 = sshll.u32 [#allocation9], 4
          %s291 = int_to_ptr.vmem [resolvable:$true] %s290
          %296 = dma.hbm_to_vmem [thread:$0]  %s3, 1152, %s291, [#allocation10], 64, 64, 4
        $region24: #{tpu_custom_call.1} parent=11 // pred_fallthru
          _
        // Predicated region
        $region25: #{tpu_custom_call.1} parent=11 // pred_check
          %p297 = pneg %p135
        $region26: #{tpu_custom_call.1} parent=11 // pred_check_branch
          %299 = sbr.rel (%p297) target = $region28
        $region27: #{tpu_custom_call.1} parent=11 // pred_region
          %s301 = ssub.s32 16, 16
          %302 = vsyncadd [#allocation10], %s301
          %s304 = sshll.u32 [#allocation11], 4
          %s305 = int_to_ptr.vmem [resolvable:$true] %s304
          %307 = dma.hbm_to_vmem [thread:$0]  %s4, 16, %s305, [#allocation10]
        $region28: #{tpu_custom_call.1} parent=11 // pred_fallthru
          _
        // Predicated region
        $region29: #{tpu_custom_call.1} parent=11 // pred_check
          %p308 = pneg %p156
        $region30: #{tpu_custom_call.1} parent=11 // pred_check_branch
          %310 = sbr.rel (%p308) target = $region32
        $region31: #{tpu_custom_call.1} parent=11 // pred_region
          %s312 = ssub.s32 128, 128
          %313 = vsyncadd [#allocation13], %s312
          %s314 = sshll.u32 [#allocation12], 4
          %s315 = int_to_ptr.vmem [resolvable:$true] %s314
          %320 = dma.hbm_to_vmem [thread:$0]  %s5, 128, %s315, [#allocation13], 64, 64, 4
        $region32: #{tpu_custom_call.1} parent=11 // pred_fallthru
          _
        // Predicated region
        $region33: #{tpu_custom_call.1} parent=11 // pred_check
          %p321 = pneg %p177
        $region34: #{tpu_custom_call.1} parent=11 // pred_check_branch
          %323 = sbr.rel (%p321) target = $region36
        $region35: #{tpu_custom_call.1} parent=11 // pred_region
          %s325 = ssub.s32 16, 16
          %326 = vsyncadd [#allocation13], %s325
          %s328 = sshll.u32 [#allocation14], 4
          %s329 = int_to_ptr.vmem [resolvable:$true] %s328
          %331 = dma.hbm_to_vmem [thread:$0]  %s6, 16, %s329, [#allocation13]
        $region36: #{tpu_custom_call.1} parent=11 // pred_fallthru
          _
        // Predicated region
        $region37: #{tpu_custom_call.1} parent=11 // pred_check
          %p332 = pneg %p198
        $region38: #{tpu_custom_call.1} parent=11 // pred_check_branch
          %334 = sbr.rel (%p332) target = $region40
        $region39: #{tpu_custom_call.1} parent=11 // pred_region
          %s336 = ssub.s32 256, 256
          %337 = vsyncadd [#allocation16], %s336
          %s338 = sshll.u32 [#allocation15], 4
          %s339 = int_to_ptr.vmem [resolvable:$true] %s338
          %344 = dma.hbm_to_vmem [thread:$0]  %s7, 256, %s339, [#allocation16], 64, 64, 4
        $region40: #{tpu_custom_call.1} parent=11 // pred_fallthru
          _
        // Predicated region
        $region41: #{tpu_custom_call.1} parent=11 // pred_check
          %p345 = pneg %p219
        $region42: #{tpu_custom_call.1} parent=11 // pred_check_branch
          %347 = sbr.rel (%p345) target = $region44
        $region43: #{tpu_custom_call.1} parent=11 // pred_region
          %s349 = ssub.s32 16, 16
          %350 = vsyncadd [#allocation16], %s349
          %s352 = sshll.u32 [#allocation17], 4
          %s353 = int_to_ptr.vmem [resolvable:$true] %s352
          %355 = dma.hbm_to_vmem [thread:$0]  %s8, 16, %s353, [#allocation16]
        $region44: #{tpu_custom_call.1} parent=11 // pred_fallthru
          _
      $region12: #{tpu_custom_call.1} parent=5 // pred_fallthru
        _
      %p356 = scmp.lt.s32.totalorder %s25, 2
      // Predicated region
      $region45: #{tpu_custom_call.1} parent=5 // pred_check
        %p357 = pneg %p356
      $region46: #{tpu_custom_call.1} parent=5 // pred_check_branch
        %359 = sbr.rel (%p357) target = $region48
      $region47: #{tpu_custom_call.1} parent=5 // pred_region
        // Predicated region
        $region49: #{tpu_custom_call.1} parent=47 // pred_check
          %p360 = pneg %p45
        $region50: #{tpu_custom_call.1} parent=47 // pred_check_branch
          %362 = sbr.rel (%p360) target = $region52
        $region51: #{tpu_custom_call.1} parent=47 // pred_region
          %s363 = sand.u32 %s35, 1
          %s364 = scalar_lea.sflag [#allocation4], %s363
          %s365 = sand.u32 %s35, 1
          %s366 = smul.addr %s365, 32
          %s367 = scalar_lea.vmem [#allocation3], %s366
          %s369 = ssub.s32 512, 512
          %370 = vsyncadd %s364, %s369
          %s371 = smul.addr %s25, 8
          %s372 = smul.addr %s371, 64
          %s373 = scalar_lea.hbm %s0, %s372
          %s374 = sshll.u32 %s367, 4
          %s375 = int_to_ptr.vmem [resolvable:$true] %s374
          %380 = dma.hbm_to_vmem [thread:$0]  %s373, 512, %s375, %s364, 64, 64, 4
        $region52: #{tpu_custom_call.1} parent=47 // pred_fallthru
          _
      $region48: #{tpu_custom_call.1} parent=5 // pred_fallthru
        _
      %p381 = scmp.le.s32.totalorder 1, %s25
      %p382 = scmp.lt.s32.totalorder %s25, 3
      %p383 = pnand %p381, %p382
      %p384 = pneg %p383
      // Predicated region
      $region53: #{tpu_custom_call.1} parent=5 // pred_check
        _
      $region54: #{tpu_custom_call.1} parent=5 // pred_check_branch
        %386 = sbr.rel (%p383) target = $region56
      $region55: #{tpu_custom_call.1} parent=5 // pred_region
        %s387 = ssub.s32 %s25, 1
        %s388 = sand.u32 %s38, 1
        %s389 = scalar_lea.sflag [#allocation4], %s388
        %s390 = sand.u32 %s38, 1
        %s391 = smul.addr %s390, 32
        %s392 = scalar_lea.vmem [#allocation3], %s391
        // Predicated region
        $region57: #{tpu_custom_call.1} parent=55 // pred_check
          %p393 = pneg %p51
        $region58: #{tpu_custom_call.1} parent=55 // pred_check_branch
          %395 = sbr.rel (%p393) target = $region60
        $region59: #{tpu_custom_call.1} parent=55 // pred_region
          %396 = dma.done %s389, 512
        $region60: #{tpu_custom_call.1} parent=55 // pred_fallthru
          _
        // Predicated region
        $region61: #{tpu_custom_call.1} parent=55 // pred_check
          %p397 = pneg %p72
        $region62: #{tpu_custom_call.1} parent=55 // pred_check_branch
          %399 = sbr.rel (%p397) target = $region64
        $region63: #{tpu_custom_call.1} parent=55 // pred_region
          %400 = dma.done [#allocation7], 256
        $region64: #{tpu_custom_call.1} parent=55 // pred_fallthru
          _
        // Predicated region
        $region65: #{tpu_custom_call.1} parent=55 // pred_check
          %p401 = pneg %p93
        $region66: #{tpu_custom_call.1} parent=55 // pred_check_branch
          %403 = sbr.rel (%p401) target = $region68
        $region67: #{tpu_custom_call.1} parent=55 // pred_region
          %404 = dma.done [#allocation7], 16
        $region68: #{tpu_custom_call.1} parent=55 // pred_fallthru
          _
        // Predicated region
        $region69: #{tpu_custom_call.1} parent=55 // pred_check
          %p405 = pneg %p114
        $region70: #{tpu_custom_call.1} parent=55 // pred_check_branch
          %407 = sbr.rel (%p405) target = $region72
        $region71: #{tpu_custom_call.1} parent=55 // pred_region
          %408 = dma.done [#allocation10], 1152
        $region72: #{tpu_custom_call.1} parent=55 // pred_fallthru
          _
        // Predicated region
        $region73: #{tpu_custom_call.1} parent=55 // pred_check
          %p409 = pneg %p135
        $region74: #{tpu_custom_call.1} parent=55 // pred_check_branch
          %411 = sbr.rel (%p409) target = $region76
        $region75: #{tpu_custom_call.1} parent=55 // pred_region
          %412 = dma.done [#allocation10], 16
        $region76: #{tpu_custom_call.1} parent=55 // pred_fallthru
          _
        // Predicated region
        $region77: #{tpu_custom_call.1} parent=55 // pred_check
          %p413 = pneg %p156
        $region78: #{tpu_custom_call.1} parent=55 // pred_check_branch
          %415 = sbr.rel (%p413) target = $region80
        $region79: #{tpu_custom_call.1} parent=55 // pred_region
          %416 = dma.done [#allocation13], 128
        $region80: #{tpu_custom_call.1} parent=55 // pred_fallthru
          _
        // Predicated region
        $region81: #{tpu_custom_call.1} parent=55 // pred_check
          %p417 = pneg %p177
        $region82: #{tpu_custom_call.1} parent=55 // pred_check_branch
          %419 = sbr.rel (%p417) target = $region84
        $region83: #{tpu_custom_call.1} parent=55 // pred_region
          %420 = dma.done [#allocation13], 16
        $region84: #{tpu_custom_call.1} parent=55 // pred_fallthru
          _
        // Predicated region
        $region85: #{tpu_custom_call.1} parent=55 // pred_check
          %p421 = pneg %p198
        $region86: #{tpu_custom_call.1} parent=55 // pred_check_branch
          %423 = sbr.rel (%p421) target = $region88
        $region87: #{tpu_custom_call.1} parent=55 // pred_region
          %424 = dma.done [#allocation16], 256
        $region88: #{tpu_custom_call.1} parent=55 // pred_fallthru
          _
        // Predicated region
        $region89: #{tpu_custom_call.1} parent=55 // pred_check
          %p425 = pneg %p219
        $region90: #{tpu_custom_call.1} parent=55 // pred_check_branch
          %427 = sbr.rel (%p425) target = $region92
        $region91: #{tpu_custom_call.1} parent=55 // pred_region
          %428 = dma.done [#allocation16], 16
        $region92: #{tpu_custom_call.1} parent=55 // pred_fallthru
          _
        %s429 = sand.u32 %s38, 1
        %s430 = scalar_lea.sflag [#allocation4], %s429
        %s431 = sand.u32 %s38, 1
        %s432 = smul.addr %s431, 32
        %s433 = scalar_lea.vmem [#allocation3], %s432
        %p434 = pneg %p51
        %p435 = pneg %p48
        %p436 = pneg %p72
        %p437 = pneg %p69
        %p438 = pneg %p93
        %p439 = pneg %p90
        %p440 = pneg %p114
        %p441 = pneg %p111
        %p442 = pneg %p135
        %p443 = pneg %p132
        %p444 = pneg %p156
        %p445 = pneg %p153
        %p446 = pneg %p177
        %p447 = pneg %p174
        %p448 = pneg %p198
        %p449 = pneg %p195
        %p450 = pneg %p219
        %p451 = pneg %p216
        %p452 = pneg %p245
        %p453 = pneg %p242
        %s454 = sand.u32 %s232, 1
        %s455 = scalar_lea.sflag [#allocation5], %s454
        %s456 = sand.u32 %s232, 1
        %s457 = smul.addr %s456, 32
        %s458 = scalar_lea.vmem [#allocation18], %s457
        %v460 = vld [vmem:[%s392] sm:$0xf]
        %v461 = vld [vmem:[%s392 + $0x4] sm:$0xf]
        %v462 = vld [vmem:[%s392 + $0x8] sm:$0xf]
        %v463 = vld [vmem:[%s392 + $0xc] sm:$0xf]
        %v464 = vld [vmem:[%s392 + $0x10] sm:$0xf]
        %v465 = vld [vmem:[%s392 + $0x14] sm:$0xf]
        %v466 = vld [vmem:[%s392 + $0x18] sm:$0xf]
        %v467 = vld [vmem:[%s392 + $0x1c] sm:$0xf]
        %v468 = vld [vmem:[#allocation6] sm:$0xf]
        %v469 = vld [vmem:[#allocation6 + $0x4] sm:$0xf]
        %v470 = vld [vmem:[#allocation6 + $0x8] sm:$0xf]
        %v471 = vld [vmem:[#allocation6 + $0xc] sm:$0xf]
        %v472 = vld [vmem:[#allocation8] sm:$0x1]
        %v474 = vlaneseq
        %v475 = vshrl.u32 %v474, 7
        %v476 = vsub.s32 0, %v475
        %v477 = vrot.slane %v472, %v476
        %v487 = vunpack.c.l.b16 %v460
        %v488 = vunpack.c.l.b16 %v461
        %v489 = vunpack.c.l.b16 %v462
        %v490 = vunpack.c.l.b16 %v463
        %v491 = vunpack.c.l.b16 %v464
        %v492 = vunpack.c.l.b16 %v465
        %v493 = vunpack.c.l.b16 %v466
        %v494 = vunpack.c.l.b16 %v467
        %v495 = vpack.c.b16 %v488, %v487
        %v496 = vpack.c.b16 %v490, %v489
        %v497 = vpack.c.b16 %v492, %v491
        %v498 = vpack.c.b16 %v494, %v493
        %v503 = vunpack.c.l.b16 %v468
        %v504 = vunpack.c.l.b16 %v469
        %v505 = vunpack.c.l.b16 %v470
        %v506 = vunpack.c.l.b16 %v471
        %v507 = vpack.c.b16 %v504, %v503
        %v508 = vpack.c.b16 %v506, %v505
        %vm511 = vcmask 261120
        %v513 = vsel %vm511, %v495, 0
        %v516 = vsel %vm511, %v496, 0
        %v519 = vsel %vm511, %v497, 0
        %v522 = vsel %vm511, %v498, 0
        %524 = vmatprep.subr.bf16.mxu0 0
        %525 = vmatpush1.bf16.msra.mxu0 %v507
        %526 = vmatprep.subr.bf16.mxu0 0
        %527 = vmatpush1.bf16.msra.mxu0 %v508
        %528 = vmatprep.subr.bf16.mxu0 0
        %529 = vmatpush1.bf16.msra.mxu0 0
        %530 = vmatprep.subr.bf16.mxu0 0
        %531 = vmatpush1.bf16.msra.mxu0 0
        %532 = vmatprep.subr.bf16.mxu0 0
        %533 = vmatpush1.bf16.msra.mxu0 0
        %534 = vmatprep.subr.bf16.mxu0 0
        %535 = vmatpush1.bf16.msra.mxu0 0
        %536 = vmatprep.subr.bf16.mxu0 0
        %537 = vmatpush1.bf16.msra.mxu0 0
        %538 = vmatprep.subr.bf16.mxu0 0
        %539 = vmatpush1.bf16.msra.mxu0 0
        %540 = vmatprep.subr.bf16.mxu0 0
        %541 = vmatpush1.bf16.msra.mxu0 0
        %542 = vmatprep.subr.bf16.mxu0 0
        %543 = vmatpush1.bf16.msra.mxu0 0
        %544 = vmatprep.subr.bf16.mxu0 0
        %545 = vmatpush1.bf16.msra.mxu0 0
        %546 = vmatprep.subr.bf16.mxu0 0
        %547 = vmatpush1.bf16.msra.mxu0 0
        %548 = vmatprep.subr.bf16.mxu0 0
        %549 = vmatpush1.bf16.msra.mxu0 0
        %550 = vmatprep.subr.bf16.mxu0 0
        %551 = vmatpush1.bf16.msra.mxu0 0
        %552 = vmatprep.subr.bf16.mxu0 0
        %553 = vmatpush1.bf16.msra.mxu0 0
        %554 = vmatprep.subr.bf16.mxu0 0
        %555 = vmatpush1.bf16.msra.mxu0 0
        %556 = vmatprep.mubr.bf16.mxu0 0
        %557 = vmatmul.mubr.bf16.gmra.mrb[0].mxu0 %v513
        %v558 = vpop.f32.mrb[0].mxu0
        %v559 = vadd.f32 %v477, %v558
        %v560 = vpop.f32.mrb[0].mxu0
        %v561 = vpop.f32.mrb[0].mxu0
        %v562 = vadd.f32 %v477, %v561
        %v563 = vpop.f32.mrb[0].mxu0
        %564 = vmatprep.mubr.bf16.mxu0 0
        %565 = vmatmul.mubr.bf16.gmra.mrb[0].mxu0 %v516
        %v566 = vpop.f32.mrb[0].mxu0
        %v567 = vadd.f32 %v477, %v566
        %v568 = vpop.f32.mrb[0].mxu0
        %v569 = vpop.f32.mrb[0].mxu0
        %v570 = vadd.f32 %v477, %v569
        %v571 = vpop.f32.mrb[0].mxu0
        %572 = vmatprep.mubr.bf16.mxu0 0
        %573 = vmatmul.mubr.bf16.gmra.mrb[0].mxu0 %v519
        %v574 = vpop.f32.mrb[0].mxu0
        %v575 = vadd.f32 %v477, %v574
        %v576 = vpop.f32.mrb[0].mxu0
        %v577 = vpop.f32.mrb[0].mxu0
        %v578 = vadd.f32 %v477, %v577
        %v579 = vpop.f32.mrb[0].mxu0
        %580 = vmatprep.mubr.bf16.mxu0 0
        %581 = vmatmul.mubr.bf16.gmra.mrb[0].mxu0 %v522
        %v582 = vpop.f32.mrb[0].mxu0
        %v583 = vadd.f32 %v477, %v582
        %v584 = vpop.f32.mrb[0].mxu0
        %v585 = vpop.f32.mrb[0].mxu0
        %v586 = vadd.f32 %v477, %v585
        %v587 = vpop.f32.mrb[0].mxu0
        %588 = vdwg.mxu0
        %v589 = vmax.f32 %v559, 0.0
        %v590 = vmax.f32 %v562, 0.0
        %v591 = vmax.f32 %v567, 0.0
        %v592 = vmax.f32 %v570, 0.0
        %v593 = vmax.f32 %v575, 0.0
        %v594 = vmax.f32 %v578, 0.0
        %v595 = vmax.f32 %v583, 0.0
        %v596 = vmax.f32 %v586, 0.0
        %vm597 = vcmask 125952
        %598 = vst.msk [vmem:[#allocation2] sm:$0xf] %vm597, 0
        %vm599 = vcmask 122880
        %600 = vst.msk [vmem:[#allocation2 + $0x4] sm:$0x1] %vm599, 0
        %s601 = scalar_lea.vmem [#allocation2], 72
        %602 = vst.msk [vmem:[%s601] sm:$0xf] %vm597, 0
        %603 = vst.msk [vmem:[%s601 + $0x4] sm:$0x1] %vm599, 0
        %vm604 = vcmask 122880
        %vm605 = vsmask.f32 256
        %vm606 = vmand %vm604, %vm605
        %v607 = vld [vmem:[#allocation2] sm:$0x1]
        %v608 = vsel %vm606, 0, %v607
        %609 = vst [vmem:[#allocation2] sm:$0x1] %v608
        %v610 = vld [vmem:[#allocation2 + $0x8] sm:$0x1]
        %v611 = vsel %vm606, 0, %v610
        %612 = vst [vmem:[#allocation2 + $0x8] sm:$0x1] %v611
        %v613 = vld [vmem:[#allocation2 + $0x10] sm:$0x1]
        %v614 = vsel %vm606, 0, %v613
        %615 = vst [vmem:[#allocation2 + $0x10] sm:$0x1] %v614
        %v616 = vld [vmem:[#allocation2 + $0x18] sm:$0x1]
        %v617 = vsel %vm606, 0, %v616
        %618 = vst [vmem:[#allocation2 + $0x18] sm:$0x1] %v617
        %v619 = vld [vmem:[#allocation2 + $0x20] sm:$0x1]
        %v620 = vsel %vm606, 0, %v619
        %621 = vst [vmem:[#allocation2 + $0x20] sm:$0x1] %v620
        %v622 = vld [vmem:[#allocation2 + $0x28] sm:$0x1]
        %v623 = vsel %vm606, 0, %v622
        %624 = vst [vmem:[#allocation2 + $0x28] sm:$0x1] %v623
        %v625 = vld [vmem:[#allocation2 + $0x30] sm:$0x1]
        %v626 = vsel %vm606, 0, %v625
        %627 = vst [vmem:[#allocation2 + $0x30] sm:$0x1] %v626
        %v628 = vld [vmem:[#allocation2 + $0x38] sm:$0x1]
        %v629 = vsel %vm606, 0, %v628
        %630 = vst [vmem:[#allocation2 + $0x38] sm:$0x1] %v629
        %v631 = vld [vmem:[#allocation2 + $0x40] sm:$0x1]
        %v632 = vsel %vm606, 0, %v631
        %633 = vst [vmem:[#allocation2 + $0x40] sm:$0x1] %v632
        %v634 = vld [vmem:[#allocation2 + $0x48] sm:$0x1]
        %v635 = vsel %vm606, 0, %v634
        %636 = vst [vmem:[#allocation2 + $0x48] sm:$0x1] %v635
        %vm637 = vsmask.f32 7938
        %vm638 = vmand %vm604, %vm637
        %v639 = vld [vmem:[#allocation2 + $0x4] sm:$0x1]
        %v640 = vsel %vm638, 0, %v639
        %641 = vst [vmem:[#allocation2 + $0x4] sm:$0x1] %v640
        %v642 = vld [vmem:[#allocation2 + $0xc] sm:$0x1]
        %v643 = vsel %vm638, 0, %v642
        %644 = vst [vmem:[#allocation2 + $0xc] sm:$0x1] %v643
        %v645 = vld [vmem:[#allocation2 + $0x14] sm:$0x1]
        %v646 = vsel %vm638, 0, %v645
        %647 = vst [vmem:[#allocation2 + $0x14] sm:$0x1] %v646
        %v648 = vld [vmem:[#allocation2 + $0x1c] sm:$0x1]
        %v649 = vsel %vm638, 0, %v648
        %650 = vst [vmem:[#allocation2 + $0x1c] sm:$0x1] %v649
        %v651 = vld [vmem:[#allocation2 + $0x24] sm:$0x1]
        %v652 = vsel %vm638, 0, %v651
        %653 = vst [vmem:[#allocation2 + $0x24] sm:$0x1] %v652
        %v654 = vld [vmem:[#allocation2 + $0x2c] sm:$0x1]
        %v655 = vsel %vm638, 0, %v654
        %656 = vst [vmem:[#allocation2 + $0x2c] sm:$0x1] %v655
        %v657 = vld [vmem:[#allocation2 + $0x34] sm:$0x1]
        %v658 = vsel %vm638, 0, %v657
        %659 = vst [vmem:[#allocation2 + $0x34] sm:$0x1] %v658
        %v660 = vld [vmem:[#allocation2 + $0x3c] sm:$0x1]
        %v661 = vsel %vm638, 0, %v660
        %662 = vst [vmem:[#allocation2 + $0x3c] sm:$0x1] %v661
        %v663 = vld [vmem:[#allocation2 + $0x44] sm:$0x1]
        %v664 = vsel %vm638, 0, %v663
        %665 = vst [vmem:[#allocation2 + $0x44] sm:$0x1] %v664
        %v666 = vld [vmem:[#allocation2 + $0x4c] sm:$0x1]
        %v667 = vsel %vm638, 0, %v666
        %668 = vst [vmem:[#allocation2 + $0x4c] sm:$0x1] %v667
        %v669 = vpack.c.bf16 %v589, %v589
        %v670 = vpack.c.bf16 %v590, %v590
        %v671 = vpack.c.bf16 %v591, %v591
        %v672 = vpack.c.bf16 %v592, %v592
        %v673 = vpack.c.bf16 %v593, %v593
        %v674 = vpack.c.bf16 %v594, %v594
        %v675 = vpack.c.bf16 %v595, %v595
        %v676 = vpack.c.bf16 %v596, %v596
        %v685 = vunpack.c.l.b16 %v669
        %v686 = vunpack.c.l.b16 %v670
        %v687 = vunpack.c.l.b16 %v671
        %v688 = vunpack.c.l.b16 %v672
        %v689 = vunpack.c.l.b16 %v673
        %v690 = vunpack.c.l.b16 %v674
        %v691 = vunpack.c.l.b16 %v675
        %v692 = vunpack.c.l.b16 %v676
        %v693 = vpack.c.b16 %v685, %v685
        %v694 = vpack.c.b16 %v686, %v686
        %v695 = vpack.c.b16 %v687, %v687
        %v696 = vpack.c.b16 %v688, %v688
        %v697 = vpack.c.b16 %v689, %v689
        %v698 = vpack.c.b16 %v690, %v690
        %v699 = vpack.c.b16 %v691, %v691
        %v700 = vpack.c.b16 %v692, %v692
        %v702 = vshrl.u32 %v693, 16
        %v704 = vrot.slane %v702, 7
        %v705 = vshll.u32 %v693, 16
        %v707 = vor.u32 %v704, %v705
        %v708 = vrot.slane %v704, 4
        %v710 = vshrl.u32 %v694, 16
        %v712 = vrot.slane %v710, 7
        %v713 = vshll.u32 %v694, 16
        %v715 = vor.u32 %v712, %v713
        %v716 = vrot.slane %v712, 4
        %v718 = vshrl.u32 %v695, 16
        %v720 = vrot.slane %v718, 7
        %v721 = vshll.u32 %v695, 16
        %v723 = vor.u32 %v720, %v721
        %v724 = vrot.slane %v720, 4
        %v726 = vshrl.u32 %v696, 16
        %v728 = vrot.slane %v726, 7
        %v729 = vshll.u32 %v696, 16
        %v731 = vor.u32 %v728, %v729
        %v732 = vrot.slane %v728, 4
        %v734 = vshrl.u32 %v697, 16
        %v736 = vrot.slane %v734, 7
        %v737 = vshll.u32 %v697, 16
        %v739 = vor.u32 %v736, %v737
        %v740 = vrot.slane %v736, 4
        %v742 = vshrl.u32 %v698, 16
        %v744 = vrot.slane %v742, 7
        %v745 = vshll.u32 %v698, 16
        %v747 = vor.u32 %v744, %v745
        %v748 = vrot.slane %v744, 4
        %v750 = vshrl.u32 %v699, 16
        %v752 = vrot.slane %v750, 7
        %v753 = vshll.u32 %v699, 16
        %v755 = vor.u32 %v752, %v753
        %v756 = vrot.slane %v752, 4
        %v758 = vshrl.u32 %v700, 16
        %v760 = vrot.slane %v758, 7
        %v761 = vshll.u32 %v700, 16
        %v763 = vor.u32 %v760, %v761
        %v764 = vrot.slane %v760, 4
        %s781 = scalar_lea.vmem [#allocation2], 8
        %vm782 = vcmask 125952
        %vm783 = vmand %vm782, %vm637
        %v784 = vld [vmem:[%s781] sm:$0xf]
        %v785 = vsel %vm783, %v707, %v784
        %786 = vst [vmem:[%s781] sm:$0xf] %v785
        %v787 = vld [vmem:[%s781 + $0x4] sm:$0x1]
        %v788 = vsel %vm606, %v708, %v787
        %789 = vst [vmem:[%s781 + $0x4] sm:$0x1] %v788
        %v790 = vld [vmem:[%s781 + $0x8] sm:$0xf]
        %v791 = vsel %vm783, %v715, %v790
        %792 = vst [vmem:[%s781 + $0x8] sm:$0xf] %v791
        %v793 = vld [vmem:[%s781 + $0xc] sm:$0x1]
        %v794 = vsel %vm606, %v716, %v793
        %795 = vst [vmem:[%s781 + $0xc] sm:$0x1] %v794
        %v796 = vld [vmem:[%s781 + $0x10] sm:$0xf]
        %v797 = vsel %vm783, %v723, %v796
        %798 = vst [vmem:[%s781 + $0x10] sm:$0xf] %v797
        %v799 = vld [vmem:[%s781 + $0x14] sm:$0x1]
        %v800 = vsel %vm606, %v724, %v799
        %801 = vst [vmem:[%s781 + $0x14] sm:$0x1] %v800
        %v802 = vld [vmem:[%s781 + $0x18] sm:$0xf]
        %v803 = vsel %vm783, %v731, %v802
        %804 = vst [vmem:[%s781 + $0x18] sm:$0xf] %v803
        %v805 = vld [vmem:[%s781 + $0x1c] sm:$0x1]
        %v806 = vsel %vm606, %v732, %v805
        %807 = vst [vmem:[%s781 + $0x1c] sm:$0x1] %v806
        %v808 = vld [vmem:[%s781 + $0x20] sm:$0xf]
        %v809 = vsel %vm783, %v739, %v808
        %810 = vst [vmem:[%s781 + $0x20] sm:$0xf] %v809
        %v811 = vld [vmem:[%s781 + $0x24] sm:$0x1]
        %v812 = vsel %vm606, %v740, %v811
        %813 = vst [vmem:[%s781 + $0x24] sm:$0x1] %v812
        %v814 = vld [vmem:[%s781 + $0x28] sm:$0xf]
        %v815 = vsel %vm783, %v747, %v814
        %816 = vst [vmem:[%s781 + $0x28] sm:$0xf] %v815
        %v817 = vld [vmem:[%s781 + $0x2c] sm:$0x1]
        %v818 = vsel %vm606, %v748, %v817
        %819 = vst [vmem:[%s781 + $0x2c] sm:$0x1] %v818
        %v820 = vld [vmem:[%s781 + $0x30] sm:$0xf]
        %v821 = vsel %vm783, %v755, %v820
        %822 = vst [vmem:[%s781 + $0x30] sm:$0xf] %v821
        %v823 = vld [vmem:[%s781 + $0x34] sm:$0x1]
        %v824 = vsel %vm606, %v756, %v823
        %825 = vst [vmem:[%s781 + $0x34] sm:$0x1] %v824
        %v826 = vld [vmem:[%s781 + $0x38] sm:$0xf]
        %v827 = vsel %vm783, %v763, %v826
        %828 = vst [vmem:[%s781 + $0x38] sm:$0xf] %v827
        %v829 = vld [vmem:[%s781 + $0x3c] sm:$0x1]
        %v830 = vsel %vm606, %v764, %v829
        %831 = vst [vmem:[%s781 + $0x3c] sm:$0x1] %v830
        %v832 = vld [vmem:[#allocation2] sm:$0xf]
        %v833 = vld [vmem:[#allocation2 + $0x8] sm:$0xf]
        %v834 = vld [vmem:[#allocation2 + $0x10] sm:$0xf]
        %v835 = vld [vmem:[#allocation2 + $0x18] sm:$0xf]
        %v836 = vld [vmem:[#allocation2 + $0x20] sm:$0xf]
        %v837 = vld [vmem:[#allocation2 + $0x28] sm:$0xf]
        %v838 = vld [vmem:[#allocation2 + $0x30] sm:$0xf]
        %v839 = vld [vmem:[#allocation2 + $0x38] sm:$0xf]
        %v840 = vld [vmem:[#allocation2 + $0x4] sm:$0x1]
        %v841 = vld [vmem:[#allocation2 + $0xc] sm:$0x1]
        %v842 = vld [vmem:[#allocation2 + $0x14] sm:$0x1]
        %v843 = vld [vmem:[#allocation2 + $0x1c] sm:$0x1]
        %v844 = vld [vmem:[#allocation2 + $0x24] sm:$0x1]
        %v845 = vld [vmem:[#allocation2 + $0x2c] sm:$0x1]
        %v846 = vld [vmem:[#allocation2 + $0x34] sm:$0x1]
        %v847 = vld [vmem:[#allocation2 + $0x3c] sm:$0x1]
        %vm848 = vsmask.f32 3328
        %vm849 = vsmask.f32 7440
        %vm850 = vmor %vm848, %vm849
        %v852 = vshrl.u32 %v832, 16
        %v854 = vrot.slane %v852, 4
        %v855 = vshll.u32 %v832, 16
        %v857 = vrot.slane %v855, 5
        %v858 = vor.u32 %v854, %v857
        %v859 = vrot.slane %v858, 4
        %v861 = vshll.u32 %v840, 16
        %v863 = vrot.slane %v861, 5
        %v864 = vsel %vm850, %v859, %v863
        %v866 = vshrl.u32 %v833, 16
        %v868 = vrot.slane %v866, 4
        %v869 = vshll.u32 %v833, 16
        %v871 = vrot.slane %v869, 5
        %v872 = vor.u32 %v868, %v871
        %v873 = vrot.slane %v872, 4
        %v875 = vshll.u32 %v841, 16
        %v877 = vrot.slane %v875, 5
        %v878 = vsel %vm850, %v873, %v877
        %v880 = vshrl.u32 %v834, 16
        %v882 = vrot.slane %v880, 4
        %v883 = vshll.u32 %v834, 16
        %v885 = vrot.slane %v883, 5
        %v886 = vor.u32 %v882, %v885
        %v887 = vrot.slane %v886, 4
        %v889 = vshll.u32 %v842, 16
        %v891 = vrot.slane %v889, 5
        %v892 = vsel %vm850, %v887, %v891
        %v894 = vshrl.u32 %v835, 16
        %v896 = vrot.slane %v894, 4
        %v897 = vshll.u32 %v835, 16
        %v899 = vrot.slane %v897, 5
        %v900 = vor.u32 %v896, %v899
        %v901 = vrot.slane %v900, 4
        %v903 = vshll.u32 %v843, 16
        %v905 = vrot.slane %v903, 5
        %v906 = vsel %vm850, %v901, %v905
        %v908 = vshrl.u32 %v836, 16
        %v910 = vrot.slane %v908, 4
        %v911 = vshll.u32 %v836, 16
        %v913 = vrot.slane %v911, 5
        %v914 = vor.u32 %v910, %v913
        %v915 = vrot.slane %v914, 4
        %v917 = vshll.u32 %v844, 16
        %v919 = vrot.slane %v917, 5
        %v920 = vsel %vm850, %v915, %v919
        %v922 = vshrl.u32 %v837, 16
        %v924 = vrot.slane %v922, 4
        %v925 = vshll.u32 %v837, 16
        %v927 = vrot.slane %v925, 5
        %v928 = vor.u32 %v924, %v927
        %v929 = vrot.slane %v928, 4
        %v931 = vshll.u32 %v845, 16
        %v933 = vrot.slane %v931, 5
        %v934 = vsel %vm850, %v929, %v933
        %v936 = vshrl.u32 %v838, 16
        %v938 = vrot.slane %v936, 4
        %v939 = vshll.u32 %v838, 16
        %v941 = vrot.slane %v939, 5
        %v942 = vor.u32 %v938, %v941
        %v943 = vrot.slane %v942, 4
        %v945 = vshll.u32 %v846, 16
        %v947 = vrot.slane %v945, 5
        %v948 = vsel %vm850, %v943, %v947
        %v950 = vshrl.u32 %v839, 16
        %v952 = vrot.slane %v950, 4
        %v953 = vshll.u32 %v839, 16
        %v955 = vrot.slane %v953, 5
        %v956 = vor.u32 %v952, %v955
        %v957 = vrot.slane %v956, 4
        %v959 = vshll.u32 %v847, 16
        %v961 = vrot.slane %v959, 5
        %v962 = vsel %vm850, %v957, %v961
        %v963 = vld [vmem:[#allocation2] sm:$0xe]
        %v964 = vld [vmem:[#allocation2 + $0x8] sm:$0xe]
        %v965 = vld [vmem:[#allocation2 + $0x10] sm:$0xe]
        %v966 = vld [vmem:[#allocation2 + $0x18] sm:$0xe]
        %v967 = vld [vmem:[#allocation2 + $0x20] sm:$0xe]
        %v968 = vld [vmem:[#allocation2 + $0x28] sm:$0xe]
        %v969 = vld [vmem:[#allocation2 + $0x30] sm:$0xe]
        %v970 = vld [vmem:[#allocation2 + $0x38] sm:$0xe]
        %vm987 = vcmask 1042432
        %vm988 = vcmask 1046532
        %vm989 = vmor %vm987, %vm988
        %v990 = vrot.slane %v963, 5
        %v991 = vrot.slane %v990, 4
        %v992 = vrot.slane %v840, 5
        %v993 = vsel %vm989, %v991, %v992
        %v994 = vrot.slane %v964, 5
        %v995 = vrot.slane %v994, 4
        %v996 = vrot.slane %v841, 5
        %v997 = vsel %vm989, %v995, %v996
        %v998 = vrot.slane %v965, 5
        %v999 = vrot.slane %v998, 4
        %v1000 = vrot.slane %v842, 5
        %v1001 = vsel %vm989, %v999, %v1000
        %v1002 = vrot.slane %v966, 5
        %v1003 = vrot.slane %v1002, 4
        %v1004 = vrot.slane %v843, 5
        %v1005 = vsel %vm989, %v1003, %v1004
        %v1006 = vrot.slane %v967, 5
        %v1007 = vrot.slane %v1006, 4
        %v1008 = vrot.slane %v844, 5
        %v1009 = vsel %vm989, %v1007, %v1008
        %v1010 = vrot.slane %v968, 5
        %v1011 = vrot.slane %v1010, 4
        %v1012 = vrot.slane %v845, 5
        %v1013 = vsel %vm989, %v1011, %v1012
        %v1014 = vrot.slane %v969, 5
        %v1015 = vrot.slane %v1014, 4
        %v1016 = vrot.slane %v846, 5
        %v1017 = vsel %vm989, %v1015, %v1016
        %v1018 = vrot.slane %v970, 5
        %v1019 = vrot.slane %v1018, 4
        %v1020 = vrot.slane %v847, 5
        %v1021 = vsel %vm989, %v1019, %v1020
        %v1022 = vld [vmem:[%s781] sm:$0xf]
        %v1023 = vld [vmem:[%s781 + $0x8] sm:$0xf]
        %v1024 = vld [vmem:[%s781 + $0x10] sm:$0xf]
        %v1025 = vld [vmem:[%s781 + $0x18] sm:$0xf]
        %v1026 = vld [vmem:[%s781 + $0x20] sm:$0xf]
        %v1027 = vld [vmem:[%s781 + $0x28] sm:$0xf]
        %v1028 = vld [vmem:[%s781 + $0x30] sm:$0xf]
        %v1029 = vld [vmem:[%s781 + $0x38] sm:$0xf]
        %v1030 = vld [vmem:[%s781 + $0x4] sm:$0x1]
        %v1031 = vld [vmem:[%s781 + $0xc] sm:$0x1]
        %v1032 = vld [vmem:[%s781 + $0x14] sm:$0x1]
        %v1033 = vld [vmem:[%s781 + $0x1c] sm:$0x1]
        %v1034 = vld [vmem:[%s781 + $0x24] sm:$0x1]
        %v1035 = vld [vmem:[%s781 + $0x2c] sm:$0x1]
        %v1036 = vld [vmem:[%s781 + $0x34] sm:$0x1]
        %v1037 = vld [vmem:[%s781 + $0x3c] sm:$0x1]
        %v1039 = vshrl.u32 %v1022, 16
        %v1041 = vrot.slane %v1039, 4
        %v1042 = vshll.u32 %v1022, 16
        %v1044 = vrot.slane %v1042, 5
        %v1045 = vor.u32 %v1041, %v1044
        %v1046 = vrot.slane %v1045, 4
        %v1048 = vshll.u32 %v1030, 16
        %v1050 = vrot.slane %v1048, 5
        %v1051 = vsel %vm850, %v1046, %v1050
        %v1053 = vshrl.u32 %v1023, 16
        %v1055 = vrot.slane %v1053, 4
        %v1056 = vshll.u32 %v1023, 16
        %v1058 = vrot.slane %v1056, 5
        %v1059 = vor.u32 %v1055, %v1058
        %v1060 = vrot.slane %v1059, 4
        %v1062 = vshll.u32 %v1031, 16
        %v1064 = vrot.slane %v1062, 5
        %v1065 = vsel %vm850, %v1060, %v1064
        %v1067 = vshrl.u32 %v1024, 16
        %v1069 = vrot.slane %v1067, 4
        %v1070 = vshll.u32 %v1024, 16
        %v1072 = vrot.slane %v1070, 5
        %v1073 = vor.u32 %v1069, %v1072
        %v1074 = vrot.slane %v1073, 4
        %v1076 = vshll.u32 %v1032, 16
        %v1078 = vrot.slane %v1076, 5
        %v1079 = vsel %vm850, %v1074, %v1078
        %v1081 = vshrl.u32 %v1025, 16
        %v1083 = vrot.slane %v1081, 4
        %v1084 = vshll.u32 %v1025, 16
        %v1086 = vrot.slane %v1084, 5
        %v1087 = vor.u32 %v1083, %v1086
        %v1088 = vrot.slane %v1087, 4
        %v1090 = vshll.u32 %v1033, 16
        %v1092 = vrot.slane %v1090, 5
        %v1093 = vsel %vm850, %v1088, %v1092
        %v1095 = vshrl.u32 %v1026, 16
        %v1097 = vrot.slane %v1095, 4
        %v1098 = vshll.u32 %v1026, 16
        %v1100 = vrot.slane %v1098, 5
        %v1101 = vor.u32 %v1097, %v1100
        %v1102 = vrot.slane %v1101, 4
        %v1104 = vshll.u32 %v1034, 16
        %v1106 = vrot.slane %v1104, 5
        %v1107 = vsel %vm850, %v1102, %v1106
        %v1109 = vshrl.u32 %v1027, 16
        %v1111 = vrot.slane %v1109, 4
        %v1112 = vshll.u32 %v1027, 16
        %v1114 = vrot.slane %v1112, 5
        %v1115 = vor.u32 %v1111, %v1114
        %v1116 = vrot.slane %v1115, 4
        %v1118 = vshll.u32 %v1035, 16
        %v1120 = vrot.slane %v1118, 5
        %v1121 = vsel %vm850, %v1116, %v1120
        %v1123 = vshrl.u32 %v1028, 16
        %v1125 = vrot.slane %v1123, 4
        %v1126 = vshll.u32 %v1028, 16
        %v1128 = vrot.slane %v1126, 5
        %v1129 = vor.u32 %v1125, %v1128
        %v1130 = vrot.slane %v1129, 4
        %v1132 = vshll.u32 %v1036, 16
        %v1134 = vrot.slane %v1132, 5
        %v1135 = vsel %vm850, %v1130, %v1134
        %v1137 = vshrl.u32 %v1029, 16
        %v1139 = vrot.slane %v1137, 4
        %v1140 = vshll.u32 %v1029, 16
        %v1142 = vrot.slane %v1140, 5
        %v1143 = vor.u32 %v1139, %v1142
        %v1144 = vrot.slane %v1143, 4
        %v1146 = vshll.u32 %v1037, 16
        %v1148 = vrot.slane %v1146, 5
        %v1149 = vsel %vm850, %v1144, %v1148
        %v1150 = vld [vmem:[%s781] sm:$0xe]
        %v1151 = vld [vmem:[%s781 + $0x8] sm:$0xe]
        %v1152 = vld [vmem:[%s781 + $0x10] sm:$0xe]
        %v1153 = vld [vmem:[%s781 + $0x18] sm:$0xe]
        %v1154 = vld [vmem:[%s781 + $0x20] sm:$0xe]
        %v1155 = vld [vmem:[%s781 + $0x28] sm:$0xe]
        %v1156 = vld [vmem:[%s781 + $0x30] sm:$0xe]
        %v1157 = vld [vmem:[%s781 + $0x38] sm:$0xe]
        %v1174 = vrot.slane %v1150, 5
        %v1175 = vrot.slane %v1174, 4
        %v1176 = vrot.slane %v1030, 5
        %v1177 = vsel %vm989, %v1175, %v1176
        %v1178 = vrot.slane %v1151, 5
        %v1179 = vrot.slane %v1178, 4
        %v1180 = vrot.slane %v1031, 5
        %v1181 = vsel %vm989, %v1179, %v1180
        %v1182 = vrot.slane %v1152, 5
        %v1183 = vrot.slane %v1182, 4
        %v1184 = vrot.slane %v1032, 5
        %v1185 = vsel %vm989, %v1183, %v1184
        %v1186 = vrot.slane %v1153, 5
        %v1187 = vrot.slane %v1186, 4
        %v1188 = vrot.slane %v1033, 5
        %v1189 = vsel %vm989, %v1187, %v1188
        %v1190 = vrot.slane %v1154, 5
        %v1191 = vrot.slane %v1190, 4
        %v1192 = vrot.slane %v1034, 5
        %v1193 = vsel %vm989, %v1191, %v1192
        %v1194 = vrot.slane %v1155, 5
        %v1195 = vrot.slane %v1194, 4
        %v1196 = vrot.slane %v1035, 5
        %v1197 = vsel %vm989, %v1195, %v1196
        %v1198 = vrot.slane %v1156, 5
        %v1199 = vrot.slane %v1198, 4
        %v1200 = vrot.slane %v1036, 5
        %v1201 = vsel %vm989, %v1199, %v1200
        %v1202 = vrot.slane %v1157, 5
        %v1203 = vrot.slane %v1202, 4
        %v1204 = vrot.slane %v1037, 5
        %v1205 = vsel %vm989, %v1203, %v1204
        %s1206 = scalar_lea.vmem [#allocation2], 16
        %v1207 = vld [vmem:[%s1206] sm:$0xf]
        %v1208 = vld [vmem:[%s1206 + $0x8] sm:$0xf]
        %v1209 = vld [vmem:[%s1206 + $0x10] sm:$0xf]
        %v1210 = vld [vmem:[%s1206 + $0x18] sm:$0xf]
        %v1211 = vld [vmem:[%s1206 + $0x20] sm:$0xf]
        %v1212 = vld [vmem:[%s1206 + $0x28] sm:$0xf]
        %v1213 = vld [vmem:[%s1206 + $0x30] sm:$0xf]
        %v1214 = vld [vmem:[%s1206 + $0x38] sm:$0xf]
        %v1215 = vld [vmem:[%s1206 + $0x4] sm:$0x1]
        %v1216 = vld [vmem:[%s1206 + $0xc] sm:$0x1]
        %v1217 = vld [vmem:[%s1206 + $0x14] sm:$0x1]
        %v1218 = vld [vmem:[%s1206 + $0x1c] sm:$0x1]
        %v1219 = vld [vmem:[%s1206 + $0x24] sm:$0x1]
        %v1220 = vld [vmem:[%s1206 + $0x2c] sm:$0x1]
        %v1221 = vld [vmem:[%s1206 + $0x34] sm:$0x1]
        %v1222 = vld [vmem:[%s1206 + $0x3c] sm:$0x1]
        %v1224 = vshrl.u32 %v1207, 16
        %v1226 = vrot.slane %v1224, 4
        %v1227 = vshll.u32 %v1207, 16
        %v1229 = vrot.slane %v1227, 5
        %v1230 = vor.u32 %v1226, %v1229
        %v1231 = vrot.slane %v1230, 4
        %v1233 = vshll.u32 %v1215, 16
        %v1235 = vrot.slane %v1233, 5
        %v1236 = vsel %vm850, %v1231, %v1235
        %v1238 = vshrl.u32 %v1208, 16
        %v1240 = vrot.slane %v1238, 4
        %v1241 = vshll.u32 %v1208, 16
        %v1243 = vrot.slane %v1241, 5
        %v1244 = vor.u32 %v1240, %v1243
        %v1245 = vrot.slane %v1244, 4
        %v1247 = vshll.u32 %v1216, 16
        %v1249 = vrot.slane %v1247, 5
        %v1250 = vsel %vm850, %v1245, %v1249
        %v1252 = vshrl.u32 %v1209, 16
        %v1254 = vrot.slane %v1252, 4
        %v1255 = vshll.u32 %v1209, 16
        %v1257 = vrot.slane %v1255, 5
        %v1258 = vor.u32 %v1254, %v1257
        %v1259 = vrot.slane %v1258, 4
        %v1261 = vshll.u32 %v1217, 16
        %v1263 = vrot.slane %v1261, 5
        %v1264 = vsel %vm850, %v1259, %v1263
        %v1266 = vshrl.u32 %v1210, 16
        %v1268 = vrot.slane %v1266, 4
        %v1269 = vshll.u32 %v1210, 16
        %v1271 = vrot.slane %v1269, 5
        %v1272 = vor.u32 %v1268, %v1271
        %v1273 = vrot.slane %v1272, 4
        %v1275 = vshll.u32 %v1218, 16
        %v1277 = vrot.slane %v1275, 5
        %v1278 = vsel %vm850, %v1273, %v1277
        %v1280 = vshrl.u32 %v1211, 16
        %v1282 = vrot.slane %v1280, 4
        %v1283 = vshll.u32 %v1211, 16
        %v1285 = vrot.slane %v1283, 5
        %v1286 = vor.u32 %v1282, %v1285
        %v1287 = vrot.slane %v1286, 4
        %v1289 = vshll.u32 %v1219, 16
        %v1291 = vrot.slane %v1289, 5
        %v1292 = vsel %vm850, %v1287, %v1291
        %v1294 = vshrl.u32 %v1212, 16
        %v1296 = vrot.slane %v1294, 4
        %v1297 = vshll.u32 %v1212, 16
        %v1299 = vrot.slane %v1297, 5
        %v1300 = vor.u32 %v1296, %v1299
        %v1301 = vrot.slane %v1300, 4
        %v1303 = vshll.u32 %v1220, 16
        %v1305 = vrot.slane %v1303, 5
        %v1306 = vsel %vm850, %v1301, %v1305
        %v1308 = vshrl.u32 %v1213, 16
        %v1310 = vrot.slane %v1308, 4
        %v1311 = vshll.u32 %v1213, 16
        %v1313 = vrot.slane %v1311, 5
        %v1314 = vor.u32 %v1310, %v1313
        %v1315 = vrot.slane %v1314, 4
        %v1317 = vshll.u32 %v1221, 16
        %v1319 = vrot.slane %v1317, 5
        %v1320 = vsel %vm850, %v1315, %v1319
        %v1322 = vshrl.u32 %v1214, 16
        %v1324 = vrot.slane %v1322, 4
        %v1325 = vshll.u32 %v1214, 16
        %v1327 = vrot.slane %v1325, 5
        %v1328 = vor.u32 %v1324, %v1327
        %v1329 = vrot.slane %v1328, 4
        %v1331 = vshll.u32 %v1222, 16
        %v1333 = vrot.slane %v1331, 5
        %v1334 = vsel %vm850, %v1329, %v1333
        %v1335 = vld [vmem:[%s1206] sm:$0xe]
        %v1336 = vld [vmem:[%s1206 + $0x8] sm:$0xe]
        %v1337 = vld [vmem:[%s1206 + $0x10] sm:$0xe]
        %v1338 = vld [vmem:[%s1206 + $0x18] sm:$0xe]
        %v1339 = vld [vmem:[%s1206 + $0x20] sm:$0xe]
        %v1340 = vld [vmem:[%s1206 + $0x28] sm:$0xe]
        %v1341 = vld [vmem:[%s1206 + $0x30] sm:$0xe]
        %v1342 = vld [vmem:[%s1206 + $0x38] sm:$0xe]
        %v1359 = vrot.slane %v1335, 5
        %v1360 = vrot.slane %v1359, 4
        %v1361 = vrot.slane %v1215, 5
        %v1362 = vsel %vm989, %v1360, %v1361
        %v1363 = vrot.slane %v1336, 5
        %v1364 = vrot.slane %v1363, 4
        %v1365 = vrot.slane %v1216, 5
        %v1366 = vsel %vm989, %v1364, %v1365
        %v1367 = vrot.slane %v1337, 5
        %v1368 = vrot.slane %v1367, 4
        %v1369 = vrot.slane %v1217, 5
        %v1370 = vsel %vm989, %v1368, %v1369
        %v1371 = vrot.slane %v1338, 5
        %v1372 = vrot.slane %v1371, 4
        %v1373 = vrot.slane %v1218, 5
        %v1374 = vsel %vm989, %v1372, %v1373
        %v1375 = vrot.slane %v1339, 5
        %v1376 = vrot.slane %v1375, 4
        %v1377 = vrot.slane %v1219, 5
        %v1378 = vsel %vm989, %v1376, %v1377
        %v1379 = vrot.slane %v1340, 5
        %v1380 = vrot.slane %v1379, 4
        %v1381 = vrot.slane %v1220, 5
        %v1382 = vsel %vm989, %v1380, %v1381
        %v1383 = vrot.slane %v1341, 5
        %v1384 = vrot.slane %v1383, 4
        %v1385 = vrot.slane %v1221, 5
        %v1386 = vsel %vm989, %v1384, %v1385
        %v1387 = vrot.slane %v1342, 5
        %v1388 = vrot.slane %v1387, 4
        %v1389 = vrot.slane %v1222, 5
        %v1390 = vsel %vm989, %v1388, %v1389
        %v1399 = vunpack.c.l.b16 %v832
        %v1400 = vunpack.c.l.b16 %v833
        %v1401 = vunpack.c.l.b16 %v834
        %v1402 = vunpack.c.l.b16 %v835
        %v1403 = vunpack.c.l.b16 %v836
        %v1404 = vunpack.c.l.b16 %v837
        %v1405 = vunpack.c.l.b16 %v838
        %v1406 = vunpack.c.l.b16 %v839
        %v1407 = vpack.c.b16 %v1400, %v1399
        %v1408 = vpack.c.b16 %v1402, %v1401
        %v1409 = vpack.c.b16 %v1404, %v1403
        %v1410 = vpack.c.b16 %v1406, %v1405
        %v1411 = vunpack.c.l.b16 %v864
        %v1412 = vunpack.c.l.b16 %v878
        %v1413 = vunpack.c.l.b16 %v892
        %v1414 = vunpack.c.l.b16 %v906
        %v1415 = vunpack.c.l.b16 %v920
        %v1416 = vunpack.c.l.b16 %v934
        %v1417 = vunpack.c.l.b16 %v948
        %v1418 = vunpack.c.l.b16 %v962
        %v1419 = vpack.c.b16 %v1412, %v1411
        %v1420 = vpack.c.b16 %v1414, %v1413
        %v1421 = vpack.c.b16 %v1416, %v1415
        %v1422 = vpack.c.b16 %v1418, %v1417
        %1423 = vrot.lane.b32.xlu0 %v1419, 16
        %v1424 = vpop.permute.xlu0 %1423
        %1425 = vrot.lane.b32.xlu0 %v1420, 16
        %v1426 = vpop.permute.xlu0 %1425
        %1427 = vrot.lane.b32.xlu0 %v1421, 16
        %v1428 = vpop.permute.xlu0 %1427
        %1429 = vrot.lane.b32.xlu0 %v1422, 16
        %v1430 = vpop.permute.xlu0 %1429
        %v1431 = vunpack.c.l.b16 %v993
        %v1432 = vunpack.c.l.b16 %v997
        %v1433 = vunpack.c.l.b16 %v1001
        %v1434 = vunpack.c.l.b16 %v1005
        %v1435 = vunpack.c.l.b16 %v1009
        %v1436 = vunpack.c.l.b16 %v1013
        %v1437 = vunpack.c.l.b16 %v1017
        %v1438 = vunpack.c.l.b16 %v1021
        %v1439 = vpack.c.b16 %v1432, %v1431
        %v1440 = vpack.c.b16 %v1434, %v1433
        %v1441 = vpack.c.b16 %v1436, %v1435
        %v1442 = vpack.c.b16 %v1438, %v1437
        %1443 = vrot.lane.b32.xlu0 %v1439, 32
        %v1444 = vpop.permute.xlu0 %1443
        %1445 = vrot.lane.b32.xlu0 %v1440, 32
        %v1446 = vpop.permute.xlu0 %1445
        %1447 = vrot.lane.b32.xlu0 %v1441, 32
        %v1448 = vpop.permute.xlu0 %1447
        %1449 = vrot.lane.b32.xlu0 %v1442, 32
        %v1450 = vpop.permute.xlu0 %1449
        %v1459 = vunpack.c.l.b16 %v1022
        %v1460 = vunpack.c.l.b16 %v1023
        %v1461 = vunpack.c.l.b16 %v1024
        %v1462 = vunpack.c.l.b16 %v1025
        %v1463 = vunpack.c.l.b16 %v1026
        %v1464 = vunpack.c.l.b16 %v1027
        %v1465 = vunpack.c.l.b16 %v1028
        %v1466 = vunpack.c.l.b16 %v1029
        %v1467 = vpack.c.b16 %v1460, %v1459
        %v1468 = vpack.c.b16 %v1462, %v1461
        %v1469 = vpack.c.b16 %v1464, %v1463
        %v1470 = vpack.c.b16 %v1466, %v1465
        %1471 = vrot.lane.b32.xlu0 %v1467, 48
        %v1472 = vpop.permute.xlu0 %1471
        %1473 = vrot.lane.b32.xlu0 %v1468, 48
        %v1474 = vpop.permute.xlu0 %1473
        %1475 = vrot.lane.b32.xlu0 %v1469, 48
        %v1476 = vpop.permute.xlu0 %1475
        %1477 = vrot.lane.b32.xlu0 %v1470, 48
        %v1478 = vpop.permute.xlu0 %1477
        %v1479 = vunpack.c.l.b16 %v1051
        %v1480 = vunpack.c.l.b16 %v1065
        %v1481 = vunpack.c.l.b16 %v1079
        %v1482 = vunpack.c.l.b16 %v1093
        %v1483 = vunpack.c.l.b16 %v1107
        %v1484 = vunpack.c.l.b16 %v1121
        %v1485 = vunpack.c.l.b16 %v1135
        %v1486 = vunpack.c.l.b16 %v1149
        %v1487 = vpack.c.b16 %v1480, %v1479
        %v1488 = vpack.c.b16 %v1482, %v1481
        %v1489 = vpack.c.b16 %v1484, %v1483
        %v1490 = vpack.c.b16 %v1486, %v1485
        %1491 = vrot.lane.b32.xlu0 %v1487, 64
        %v1492 = vpop.permute.xlu0 %1491
        %1493 = vrot.lane.b32.xlu0 %v1488, 64
        %v1494 = vpop.permute.xlu0 %1493
        %1495 = vrot.lane.b32.xlu0 %v1489, 64
        %v1496 = vpop.permute.xlu0 %1495
        %1497 = vrot.lane.b32.xlu0 %v1490, 64
        %v1498 = vpop.permute.xlu0 %1497
        %v1499 = vunpack.c.l.b16 %v1177
        %v1500 = vunpack.c.l.b16 %v1181
        %v1501 = vunpack.c.l.b16 %v1185
        %v1502 = vunpack.c.l.b16 %v1189
        %v1503 = vunpack.c.l.b16 %v1193
        %v1504 = vunpack.c.l.b16 %v1197
        %v1505 = vunpack.c.l.b16 %v1201
        %v1506 = vunpack.c.l.b16 %v1205
        %v1507 = vpack.c.b16 %v1500, %v1499
        %v1508 = vpack.c.b16 %v1502, %v1501
        %v1509 = vpack.c.b16 %v1504, %v1503
        %v1510 = vpack.c.b16 %v1506, %v1505
        %1511 = vrot.lane.b32.xlu0 %v1507, 80
        %v1512 = vpop.permute.xlu0 %1511
        %1513 = vrot.lane.b32.xlu0 %v1508, 80
        %v1514 = vpop.permute.xlu0 %1513
        %1515 = vrot.lane.b32.xlu0 %v1509, 80
        %v1516 = vpop.permute.xlu0 %1515
        %1517 = vrot.lane.b32.xlu0 %v1510, 80
        %v1518 = vpop.permute.xlu0 %1517
        %v1527 = vunpack.c.l.b16 %v1207
        %v1528 = vunpack.c.l.b16 %v1208
        %v1529 = vunpack.c.l.b16 %v1209
        %v1530 = vunpack.c.l.b16 %v1210
        %v1531 = vunpack.c.l.b16 %v1211
        %v1532 = vunpack.c.l.b16 %v1212
        %v1533 = vunpack.c.l.b16 %v1213
        %v1534 = vunpack.c.l.b16 %v1214
        %v1535 = vpack.c.b16 %v1528, %v1527
        %v1536 = vpack.c.b16 %v1530, %v1529
        %v1537 = vpack.c.b16 %v1532, %v1531
        %v1538 = vpack.c.b16 %v1534, %v1533
        %1539 = vrot.lane.b32.xlu0 %v1535, 96
        %v1540 = vpop.permute.xlu0 %1539
        %1541 = vrot.lane.b32.xlu0 %v1536, 96
        %v1542 = vpop.permute.xlu0 %1541
        %1543 = vrot.lane.b32.xlu0 %v1537, 96
        %v1544 = vpop.permute.xlu0 %1543
        %1545 = vrot.lane.b32.xlu0 %v1538, 96
        %v1546 = vpop.permute.xlu0 %1545
        %v1547 = vunpack.c.l.b16 %v1236
        %v1548 = vunpack.c.l.b16 %v1250
        %v1549 = vunpack.c.l.b16 %v1264
        %v1550 = vunpack.c.l.b16 %v1278
        %v1551 = vunpack.c.l.b16 %v1292
        %v1552 = vunpack.c.l.b16 %v1306
        %v1553 = vunpack.c.l.b16 %v1320
        %v1554 = vunpack.c.l.b16 %v1334
        %v1555 = vpack.c.b16 %v1548, %v1547
        %v1556 = vpack.c.b16 %v1550, %v1549
        %v1557 = vpack.c.b16 %v1552, %v1551
        %v1558 = vpack.c.b16 %v1554, %v1553
        %1559 = vrot.lane.b32.xlu0 %v1555, 112
        %v1560 = vpop.permute.xlu0 %1559
        %1561 = vrot.lane.b32.xlu0 %v1556, 112
        %v1562 = vpop.permute.xlu0 %1561
        %1563 = vrot.lane.b32.xlu0 %v1557, 112
        %v1564 = vpop.permute.xlu0 %1563
        %1565 = vrot.lane.b32.xlu0 %v1558, 112
        %v1566 = vpop.permute.xlu0 %1565
        %v1567 = vunpack.c.l.b16 %v1362
        %v1568 = vunpack.c.l.b16 %v1366
        %v1569 = vunpack.c.l.b16 %v1370
        %v1570 = vunpack.c.l.b16 %v1374
        %v1571 = vunpack.c.l.b16 %v1378
        %v1572 = vunpack.c.l.b16 %v1382
        %v1573 = vunpack.c.l.b16 %v1386
        %v1574 = vunpack.c.l.b16 %v1390
        %v1575 = vpack.c.b16 %v1568, %v1567
        %v1576 = vpack.c.b16 %v1570, %v1569
        %v1577 = vpack.c.b16 %v1572, %v1571
        %v1578 = vpack.c.b16 %v1574, %v1573
        %vm1579 = vcmask 130048
        %v1582 = vsel %vm1579, %v1407, %v1424
        %v1585 = vsel %vm1579, %v1408, %v1426
        %v1588 = vsel %vm1579, %v1409, %v1428
        %v1591 = vsel %vm1579, %v1410, %v1430
        %v1593 = vsel %vm511, %v1582, %v1444
        %v1595 = vsel %vm511, %v1585, %v1446
        %v1597 = vsel %vm511, %v1588, %v1448
        %v1599 = vsel %vm511, %v1591, %v1450
        %vm1600 = vcmask 392192
        %v1602 = vsel %vm1600, %v1593, %v1472
        %v1604 = vsel %vm1600, %v1595, %v1474
        %v1606 = vsel %vm1600, %v1597, %v1476
        %v1608 = vsel %vm1600, %v1599, %v1478
        %vm1609 = vcmask 523264
        %v1611 = vsel %vm1609, %v1602, %v1492
        %v1613 = vsel %vm1609, %v1604, %v1494
        %v1615 = vsel %vm1609, %v1606, %v1496
        %v1617 = vsel %vm1609, %v1608, %v1498
        %vm1618 = vcmask 654336
        %v1620 = vsel %vm1618, %v1611, %v1512
        %v1622 = vsel %vm1618, %v1613, %v1514
        %v1624 = vsel %vm1618, %v1615, %v1516
        %v1626 = vsel %vm1618, %v1617, %v1518
        %vm1627 = vcmask 785408
        %v1629 = vsel %vm1627, %v1620, %v1540
        %v1631 = vsel %vm1627, %v1622, %v1542
        %v1633 = vsel %vm1627, %v1624, %v1544
        %v1635 = vsel %vm1627, %v1626, %v1546
        %vm1636 = vcmask 916480
        %v1638 = vsel %vm1636, %v1629, %v1560
        %v1641 = vsel %vm1636, %v1631, %v1562
        %v1644 = vsel %vm1636, %v1633, %v1564
        %v1647 = vsel %vm1636, %v1635, %v1566
        %v1649 = vld [vmem:[#allocation9] sm:$0xf]
        %v1650 = vld [vmem:[#allocation9 + $0x4] sm:$0xf]
        %v1651 = vld [vmem:[#allocation9 + $0x8] sm:$0xf]
        %v1652 = vld [vmem:[#allocation9 + $0xc] sm:$0xf]
        %v1653 = vld [vmem:[#allocation9 + $0x10] sm:$0xf]
        %v1654 = vld [vmem:[#allocation9 + $0x14] sm:$0xf]
        %v1655 = vld [vmem:[#allocation9 + $0x18] sm:$0xf]
        %v1656 = vld [vmem:[#allocation9 + $0x1c] sm:$0xf]
        %v1657 = vld [vmem:[#allocation9 + $0x20] sm:$0xf]
        %v1658 = vld [vmem:[#allocation9 + $0x24] sm:$0xf]
        %v1659 = vld [vmem:[#allocation9 + $0x28] sm:$0xf]
        %v1660 = vld [vmem:[#allocation9 + $0x2c] sm:$0xf]
        %v1661 = vld [vmem:[#allocation9 + $0x30] sm:$0xf]
        %v1662 = vld [vmem:[#allocation9 + $0x34] sm:$0xf]
        %v1663 = vld [vmem:[#allocation9 + $0x38] sm:$0xf]
        %v1664 = vld [vmem:[#allocation9 + $0x3c] sm:$0xf]
        %v1665 = vld [vmem:[#allocation9 + $0x40] sm:$0xf]
        %v1666 = vld [vmem:[#allocation9 + $0x44] sm:$0xf]
        %v1667 = vld [vmem:[#allocation11] sm:$0x1]
        %v1669 = vlaneseq
        %v1670 = vshrl.u32 %v1669, 7
        %v1671 = vsub.s32 0, %v1670
        %v1672 = vrot.slane %v1667, %v1671
        %v1692 = vunpack.c.l.b16 %v1649
        %v1693 = vunpack.c.l.b16 %v1650
        %v1694 = vunpack.c.l.b16 %v1651
        %v1695 = vunpack.c.l.b16 %v1652
        %v1696 = vunpack.c.l.b16 %v1653
        %v1697 = vunpack.c.l.b16 %v1654
        %v1698 = vunpack.c.l.b16 %v1655
        %v1699 = vunpack.c.l.b16 %v1656
        %v1700 = vunpack.c.l.b16 %v1657
        %v1701 = vunpack.c.l.b16 %v1658
        %v1702 = vunpack.c.l.b16 %v1659
        %v1703 = vunpack.c.l.b16 %v1660
        %v1704 = vunpack.c.l.b16 %v1661
        %v1705 = vunpack.c.l.b16 %v1662
        %v1706 = vunpack.c.l.b16 %v1663
        %v1707 = vunpack.c.l.b16 %v1664
        %v1708 = vunpack.c.l.b16 %v1665
        %v1709 = vunpack.c.l.b16 %v1666
        %v1710 = vpack.c.b16 %v1693, %v1692
        %v1711 = vpack.c.b16 %v1695, %v1694
        %v1712 = vpack.c.b16 %v1697, %v1696
        %v1713 = vpack.c.b16 %v1699, %v1698
        %v1714 = vpack.c.b16 %v1701, %v1700
        %v1715 = vpack.c.b16 %v1703, %v1702
        %v1716 = vpack.c.b16 %v1705, %v1704
        %v1717 = vpack.c.b16 %v1707, %v1706
        %v1718 = vpack.c.b16 %v1709, %v1708
        %v1729 = vsel %vm1579, %v1575, 0
        %v1732 = vsel %vm1579, %v1576, 0
        %v1735 = vsel %vm1579, %v1577, 0
        %v1738 = vsel %vm1579, %v1578, 0
        %1740 = vmatprep.subr.bf16.mxu0 0
        %1741 = vmatpush1.bf16.msra.mxu0 %v1710
        %1742 = vmatprep.subr.bf16.mxu0 0
        %1743 = vmatpush1.bf16.msra.mxu0 %v1711
        %1744 = vmatprep.subr.bf16.mxu0 0
        %1745 = vmatpush1.bf16.msra.mxu0 %v1712
        %1746 = vmatprep.subr.bf16.mxu0 0
        %1747 = vmatpush1.bf16.msra.mxu0 %v1713
        %1748 = vmatprep.subr.bf16.mxu0 0
        %1749 = vmatpush1.bf16.msra.mxu0 %v1714
        %1750 = vmatprep.subr.bf16.mxu0 0
        %1751 = vmatpush1.bf16.msra.mxu0 %v1715
        %1752 = vmatprep.subr.bf16.mxu0 0
        %1753 = vmatpush1.bf16.msra.mxu0 %v1716
        %1754 = vmatprep.subr.bf16.mxu0 0
        %1755 = vmatpush1.bf16.msra.mxu0 %v1717
        %1756 = vmatprep.subr.bf16.mxu0 0
        %1757 = vmatpush1.bf16.msra.mxu0 %v1718
        %1758 = vmatprep.subr.bf16.mxu0 0
        %1759 = vmatpush1.bf16.msra.mxu0 0
        %1760 = vmatprep.subr.bf16.mxu0 0
        %1761 = vmatpush1.bf16.msra.mxu0 0
        %1762 = vmatprep.subr.bf16.mxu0 0
        %1763 = vmatpush1.bf16.msra.mxu0 0
        %1764 = vmatprep.subr.bf16.mxu0 0
        %1765 = vmatpush1.bf16.msra.mxu0 0
        %1766 = vmatprep.subr.bf16.mxu0 0
        %1767 = vmatpush1.bf16.msra.mxu0 0
        %1768 = vmatprep.subr.bf16.mxu0 0
        %1769 = vmatpush1.bf16.msra.mxu0 0
        %1770 = vmatprep.subr.bf16.mxu0 0
        %1771 = vmatpush1.bf16.msra.mxu0 0
        %1772 = vmatprep.mubr.bf16.mxu0 %v1729
        %1773 = vmatmul.mubr.bf16.gmra.mrb[0].mxu0 %v1638
        %v1774 = vpop.f32.mrb[0].mxu0
        %v1775 = vadd.f32 %v1672, %v1774
        %v1776 = vpop.f32.mrb[0].mxu0
        %v1777 = vpop.f32.mrb[0].mxu0
        %v1778 = vadd.f32 %v1672, %v1777
        %v1779 = vpop.f32.mrb[0].mxu0
        %1780 = vmatprep.mubr.bf16.mxu0 %v1732
        %1781 = vmatmul.mubr.bf16.gmra.mrb[0].mxu0 %v1641
        %v1782 = vpop.f32.mrb[0].mxu0
        %v1783 = vadd.f32 %v1672, %v1782
        %v1784 = vpop.f32.mrb[0].mxu0
        %v1785 = vpop.f32.mrb[0].mxu0
        %v1786 = vadd.f32 %v1672, %v1785
        %v1787 = vpop.f32.mrb[0].mxu0
        %1788 = vmatprep.mubr.bf16.mxu0 %v1735
        %1789 = vmatmul.mubr.bf16.gmra.mrb[0].mxu0 %v1644
        %v1790 = vpop.f32.mrb[0].mxu0
        %v1791 = vadd.f32 %v1672, %v1790
        %v1792 = vpop.f32.mrb[0].mxu0
        %v1793 = vpop.f32.mrb[0].mxu0
        %v1794 = vadd.f32 %v1672, %v1793
        %v1795 = vpop.f32.mrb[0].mxu0
        %1796 = vmatprep.mubr.bf16.mxu0 %v1738
        %1797 = vmatmul.mubr.bf16.gmra.mrb[0].mxu0 %v1647
        %v1798 = vpop.f32.mrb[0].mxu0
        %v1799 = vadd.f32 %v1672, %v1798
        %v1800 = vpop.f32.mrb[0].mxu0
        %v1801 = vpop.f32.mrb[0].mxu0
        %v1802 = vadd.f32 %v1672, %v1801
        %v1803 = vpop.f32.mrb[0].mxu0
        %1804 = vdwg.mxu0
        %v1805 = vmax.f32 %v1775, 0.0
        %v1806 = vmax.f32 %v1778, 0.0
        %v1807 = vmax.f32 %v1783, 0.0
        %v1808 = vmax.f32 %v1786, 0.0
        %v1809 = vmax.f32 %v1791, 0.0
        %v1810 = vmax.f32 %v1794, 0.0
        %v1811 = vmax.f32 %v1799, 0.0
        %v1812 = vmax.f32 %v1802, 0.0
        %v1813 = vpack.c.bf16 %v1806, %v1805
        %v1814 = vpack.c.bf16 %v1808, %v1807
        %v1815 = vpack.c.bf16 %v1810, %v1809
        %v1816 = vpack.c.bf16 %v1812, %v1811
        %v1817 = vld [vmem:[#allocation12] sm:$0xf]
        %v1818 = vld [vmem:[#allocation12 + $0x4] sm:$0xf]
        %v1819 = vld [vmem:[#allocation14] sm:$0x1]
        %v1821 = vlaneseq
        %v1822 = vshrl.u32 %v1821, 7
        %v1823 = vsub.s32 0, %v1822
        %v1824 = vrot.slane %v1819, %v1823
        %v1828 = vunpack.c.l.b16 %v1817
        %v1829 = vunpack.c.l.b16 %v1818
        %v1830 = vpack.c.b16 %v1829, %v1828
        %v1833 = vsel %vm1579, %v1813, 0
        %v1836 = vsel %vm1579, %v1814, 0
        %v1839 = vsel %vm1579, %v1815, 0
        %v1842 = vsel %vm1579, %v1816, 0
        %1844 = vmatprep.subr.bf16.mxu0 0
        %1845 = vmatpush1.bf16.msra.mxu0 %v1830
        %1846 = vmatprep.subr.bf16.mxu0 0
        %1847 = vmatpush1.bf16.msra.mxu0 0
        %1848 = vmatprep.subr.bf16.mxu0 0
        %1849 = vmatpush1.bf16.msra.mxu0 0
        %1850 = vmatprep.subr.bf16.mxu0 0
        %1851 = vmatpush1.bf16.msra.mxu0 0
        %1852 = vmatprep.subr.bf16.mxu0 0
        %1853 = vmatpush1.bf16.msra.mxu0 0
        %1854 = vmatprep.subr.bf16.mxu0 0
        %1855 = vmatpush1.bf16.msra.mxu0 0
        %1856 = vmatprep.subr.bf16.mxu0 0
        %1857 = vmatpush1.bf16.msra.mxu0 0
        %1858 = vmatprep.subr.bf16.mxu0 0
        %1859 = vmatpush1.bf16.msra.mxu0 0
        %1860 = vmatprep.subr.bf16.mxu0 0
        %1861 = vmatpush1.bf16.msra.mxu0 0
        %1862 = vmatprep.subr.bf16.mxu0 0
        %1863 = vmatpush1.bf16.msra.mxu0 0
        %1864 = vmatprep.subr.bf16.mxu0 0
        %1865 = vmatpush1.bf16.msra.mxu0 0
        %1866 = vmatprep.subr.bf16.mxu0 0
        %1867 = vmatpush1.bf16.msra.mxu0 0
        %1868 = vmatprep.subr.bf16.mxu0 0
        %1869 = vmatpush1.bf16.msra.mxu0 0
        %1870 = vmatprep.subr.bf16.mxu0 0
        %1871 = vmatpush1.bf16.msra.mxu0 0
        %1872 = vmatprep.subr.bf16.mxu0 0
        %1873 = vmatpush1.bf16.msra.mxu0 0
        %1874 = vmatprep.subr.bf16.mxu0 0
        %1875 = vmatpush1.bf16.msra.mxu0 0
        %1876 = vmatprep.mubr.bf16.mxu0 0
        %1877 = vmatmul.mubr.bf16.gmra.mrb[0].mxu0 %v1833
        %v1878 = vpop.f32.mrb[0].mxu0
        %v1879 = vadd.f32 %v1824, %v1878
        %v1880 = vpop.f32.mrb[0].mxu0
        %v1881 = vpop.f32.mrb[0].mxu0
        %v1882 = vadd.f32 %v1824, %v1881
        %v1883 = vpop.f32.mrb[0].mxu0
        %1884 = vmatprep.mubr.bf16.mxu0 0
        %1885 = vmatmul.mubr.bf16.gmra.mrb[0].mxu0 %v1836
        %v1886 = vpop.f32.mrb[0].mxu0
        %v1887 = vadd.f32 %v1824, %v1886
        %v1888 = vpop.f32.mrb[0].mxu0
        %v1889 = vpop.f32.mrb[0].mxu0
        %v1890 = vadd.f32 %v1824, %v1889
        %v1891 = vpop.f32.mrb[0].mxu0
        %1892 = vmatprep.mubr.bf16.mxu0 0
        %1893 = vmatmul.mubr.bf16.gmra.mrb[0].mxu0 %v1839
        %v1894 = vpop.f32.mrb[0].mxu0
        %v1895 = vadd.f32 %v1824, %v1894
        %v1896 = vpop.f32.mrb[0].mxu0
        %v1897 = vpop.f32.mrb[0].mxu0
        %v1898 = vadd.f32 %v1824, %v1897
        %v1899 = vpop.f32.mrb[0].mxu0
        %1900 = vmatprep.mubr.bf16.mxu0 0
        %1901 = vmatmul.mubr.bf16.gmra.mrb[0].mxu0 %v1842
        %v1902 = vpop.f32.mrb[0].mxu0
        %v1903 = vadd.f32 %v1824, %v1902
        %v1904 = vpop.f32.mrb[0].mxu0
        %v1905 = vpop.f32.mrb[0].mxu0
        %v1906 = vadd.f32 %v1824, %v1905
        %v1907 = vpop.f32.mrb[0].mxu0
        %1908 = vdwg.mxu0
        %v1909 = vld [vmem:[#allocation15] sm:$0xf]
        %v1910 = vld [vmem:[#allocation15 + $0x4] sm:$0xf]
        %v1911 = vld [vmem:[#allocation15 + $0x8] sm:$0xf]
        %v1912 = vld [vmem:[#allocation15 + $0xc] sm:$0xf]
        %v1913 = vld [vmem:[#allocation17] sm:$0x1]
        %v1915 = vlaneseq
        %v1916 = vshrl.u32 %v1915, 7
        %v1917 = vsub.s32 0, %v1916
        %v1918 = vrot.slane %v1913, %v1917
        %v1924 = vunpack.c.l.b16 %v1909
        %v1925 = vunpack.c.l.b16 %v1910
        %v1926 = vunpack.c.l.b16 %v1911
        %v1927 = vunpack.c.l.b16 %v1912
        %v1928 = vpack.c.b16 %v1925, %v1924
        %v1929 = vpack.c.b16 %v1927, %v1926
        %1932 = vmatprep.subr.bf16.mxu0 0
        %1933 = vmatpush1.bf16.msra.mxu0 %v1928
        %1934 = vmatprep.subr.bf16.mxu0 0
        %1935 = vmatpush1.bf16.msra.mxu0 %v1929
        %1936 = vmatprep.subr.bf16.mxu0 0
        %1937 = vmatpush1.bf16.msra.mxu0 0
        %1938 = vmatprep.subr.bf16.mxu0 0
        %1939 = vmatpush1.bf16.msra.mxu0 0
        %1940 = vmatprep.subr.bf16.mxu0 0
        %1941 = vmatpush1.bf16.msra.mxu0 0
        %1942 = vmatprep.subr.bf16.mxu0 0
        %1943 = vmatpush1.bf16.msra.mxu0 0
        %1944 = vmatprep.subr.bf16.mxu0 0
        %1945 = vmatpush1.bf16.msra.mxu0 0
        %1946 = vmatprep.subr.bf16.mxu0 0
        %1947 = vmatpush1.bf16.msra.mxu0 0
        %1948 = vmatprep.subr.bf16.mxu0 0
        %1949 = vmatpush1.bf16.msra.mxu0 0
        %1950 = vmatprep.subr.bf16.mxu0 0
        %1951 = vmatpush1.bf16.msra.mxu0 0
        %1952 = vmatprep.subr.bf16.mxu0 0
        %1953 = vmatpush1.bf16.msra.mxu0 0
        %1954 = vmatprep.subr.bf16.mxu0 0
        %1955 = vmatpush1.bf16.msra.mxu0 0
        %1956 = vmatprep.subr.bf16.mxu0 0
        %1957 = vmatpush1.bf16.msra.mxu0 0
        %1958 = vmatprep.subr.bf16.mxu0 0
        %1959 = vmatpush1.bf16.msra.mxu0 0
        %1960 = vmatprep.subr.bf16.mxu0 0
        %1961 = vmatpush1.bf16.msra.mxu0 0
        %1962 = vmatprep.subr.bf16.mxu0 0
        %1963 = vmatpush1.bf16.msra.mxu0 0
        %1964 = vmatprep.mubr.bf16.mxu0 0
        %1965 = vmatmul.mubr.bf16.gmra.mrb[0].mxu0 %v513
        %v1966 = vpop.f32.mrb[0].mxu0
        %v1967 = vadd.f32 %v1918, %v1966
        %v1968 = vpop.f32.mrb[0].mxu0
        %v1969 = vpop.f32.mrb[0].mxu0
        %v1970 = vadd.f32 %v1918, %v1969
        %v1971 = vpop.f32.mrb[0].mxu0
        %1972 = vmatprep.mubr.bf16.mxu0 0
        %1973 = vmatmul.mubr.bf16.gmra.mrb[0].mxu0 %v516
        %v1974 = vpop.f32.mrb[0].mxu0
        %v1975 = vadd.f32 %v1918, %v1974
        %v1976 = vpop.f32.mrb[0].mxu0
        %v1977 = vpop.f32.mrb[0].mxu0
        %v1978 = vadd.f32 %v1918, %v1977
        %v1979 = vpop.f32.mrb[0].mxu0
        %1980 = vmatprep.mubr.bf16.mxu0 0
        %1981 = vmatmul.mubr.bf16.gmra.mrb[0].mxu0 %v519
        %v1982 = vpop.f32.mrb[0].mxu0
        %v1983 = vadd.f32 %v1918, %v1982
        %v1984 = vpop.f32.mrb[0].mxu0
        %v1985 = vpop.f32.mrb[0].mxu0
        %v1986 = vadd.f32 %v1918, %v1985
        %v1987 = vpop.f32.mrb[0].mxu0
        %1988 = vmatprep.mubr.bf16.mxu0 0
        %1989 = vmatmul.mubr.bf16.gmra.mrb[0].mxu0 %v522
        %v1990 = vpop.f32.mrb[0].mxu0
        %v1991 = vadd.f32 %v1918, %v1990
        %v1992 = vpop.f32.mrb[0].mxu0
        %v1993 = vpop.f32.mrb[0].mxu0
        %v1994 = vadd.f32 %v1918, %v1993
        %v1995 = vpop.f32.mrb[0].mxu0
        %1996 = vdwg.mxu0
        %v1997 = vadd.f32 %v1879, %v1967
        %v1998 = vadd.f32 %v1882, %v1970
        %v1999 = vadd.f32 %v1887, %v1975
        %v2000 = vadd.f32 %v1890, %v1978
        %v2001 = vadd.f32 %v1895, %v1983
        %v2002 = vadd.f32 %v1898, %v1986
        %v2003 = vadd.f32 %v1903, %v1991
        %v2004 = vadd.f32 %v1906, %v1994
        %v2005 = vmax.f32 %v1997, 0.0
        %v2006 = vmax.f32 %v1998, 0.0
        %v2007 = vmax.f32 %v1999, 0.0
        %v2008 = vmax.f32 %v2000, 0.0
        %v2009 = vmax.f32 %v2001, 0.0
        %v2010 = vmax.f32 %v2002, 0.0
        %v2011 = vmax.f32 %v2003, 0.0
        %v2012 = vmax.f32 %v2004, 0.0
        %v2013 = vpack.c.bf16 %v2006, %v2005
        %v2014 = vpack.c.bf16 %v2008, %v2007
        %v2015 = vpack.c.bf16 %v2010, %v2009
        %v2016 = vpack.c.bf16 %v2012, %v2011
        %v2021 = vunpack.c.l.b16 %v2013
        %v2022 = vunpack.c.h.b16 %v2013
        %v2023 = vunpack.c.l.b16 %v2014
        %v2024 = vunpack.c.h.b16 %v2014
        %v2025 = vunpack.c.l.b16 %v2015
        %v2026 = vunpack.c.h.b16 %v2015
        %v2027 = vunpack.c.l.b16 %v2016
        %v2028 = vunpack.c.h.b16 %v2016
        %v2029 = vpack.c.b16 %v2021, %v2021
        %v2030 = vpack.c.b16 %v2022, %v2022
        %v2031 = vpack.c.b16 %v2023, %v2023
        %v2032 = vpack.c.b16 %v2024, %v2024
        %v2033 = vpack.c.b16 %v2025, %v2025
        %v2034 = vpack.c.b16 %v2026, %v2026
        %v2035 = vpack.c.b16 %v2027, %v2027
        %v2036 = vpack.c.b16 %v2028, %v2028
        %vm2045 = vcmask 519168
        %2046 = vst.msk [vmem:[%s458] sm:$0xf] %vm2045, %v2029
        %2047 = vst.msk [vmem:[%s458 + $0x4] sm:$0xf] %vm2045, %v2030
        %2048 = vst.msk [vmem:[%s458 + $0x8] sm:$0xf] %vm2045, %v2031
        %2049 = vst.msk [vmem:[%s458 + $0xc] sm:$0xf] %vm2045, %v2032
        %2050 = vst.msk [vmem:[%s458 + $0x10] sm:$0xf] %vm2045, %v2033
        %2051 = vst.msk [vmem:[%s458 + $0x14] sm:$0xf] %vm2045, %v2034
        %2052 = vst.msk [vmem:[%s458 + $0x18] sm:$0xf] %vm2045, %v2035
        %2053 = vst.msk [vmem:[%s458 + $0x1c] sm:$0xf] %vm2045, %v2036
        %s2054 = sand.u32 %s232, 1
        %s2055 = scalar_lea.sflag [#allocation5], %s2054
        %s2056 = sand.u32 %s232, 1
        %s2057 = smul.addr %s2056, 32
        %s2058 = scalar_lea.vmem [#allocation18], %s2057
        // Predicated region
        $region93: #{tpu_custom_call.1} parent=55 // pred_check
          %p2059 = pneg %p242
        $region94: #{tpu_custom_call.1} parent=55 // pred_check_branch
          %2061 = sbr.rel (%p2059) target = $region96
        $region95: #{tpu_custom_call.1} parent=55 // pred_region
          %s2063 = ssub.s32 512, 512
          %2064 = vsyncadd %s2055, %s2063
          %s2065 = smul.addr %s30, 8
          %s2066 = smul.addr %s2065, 64
          %s2067 = scalar_lea.hbm %s9, %s2066
          %s2068 = sshll.u32 %s2058, 4
          %s2069 = int_to_ptr.vmem [resolvable:$true] %s2068
          %2074 = dma.vmem_to_hbm [thread:$0]  %s2069, 512, %s2067, %s2055, 64, 64, 4
        $region96: #{tpu_custom_call.1} parent=55 // pred_fallthru
          _
      $region56: #{tpu_custom_call.1} parent=5 // pred_fallthru
        _
      %p2075 = scmp.le.s32.totalorder 2, %s25
      // Predicated region
      $region97: #{tpu_custom_call.1} parent=5 // pred_check
        %p2076 = pneg %p2075
      $region98: #{tpu_custom_call.1} parent=5 // pred_check_branch
        %2078 = sbr.rel (%p2076) target = $region100
      $region99: #{tpu_custom_call.1} parent=5 // pred_region
        %s2079 = ssub.s32 %s25, 2
        // Predicated region
        $region101: #{tpu_custom_call.1} parent=99 // pred_check
          %p2080 = pneg %p248
        $region102: #{tpu_custom_call.1} parent=99 // pred_check_branch
          %2082 = sbr.rel (%p2080) target = $region104
        $region103: #{tpu_custom_call.1} parent=99 // pred_region
          %s2083 = sand.u32 %s233, 1
          %s2084 = scalar_lea.sflag [#allocation5], %s2083
          %s2085 = sand.u32 %s233, 1
          %s2086 = smul.addr %s2085, 32
          %s2087 = scalar_lea.vmem [#allocation18], %s2086
          %2088 = dma.done %s2084, 512
        $region104: #{tpu_custom_call.1} parent=99 // pred_fallthru
          _
      $region100: #{tpu_custom_call.1} parent=5 // pred_fallthru
        _
    $region6: #{tpu_custom_call.1} parent=1 // loop_footer
      %s29 = sadd.s32 1, %s25
    $region7: #{tpu_custom_call.1} parent=1 // loop_footer_branch
      %24 = sbr.rel target = $region3
    $region8: #{tpu_custom_call.1} parent=1 // loop_exit
      _
    %2089 = vsyncpa [#allocation4], 1
    %s2090 = scalar_lea.sflag [#allocation4], 1
    %2091 = vsyncpa %s2090, 1
    %2092 = vsyncpa [#allocation7], 1
    %2093 = vsyncpa [#allocation10], 1
    %2094 = vsyncpa [#allocation13], 1
    %2095 = vsyncpa [#allocation16], 1
    %2096 = vsyncpa [#allocation5], 1
    %s2097 = scalar_lea.sflag [#allocation5], 1
    %2098 = vsyncpa %s2097, 1

</llo_original>
